<compile_context>
chip_gen: v5e
topology: v5e:2x2
jax: 0.10.0
libtpu: 0.0.40
codegen_flags: <defaults>
</compile_context>

<pallas_src>
import math

import jax
import jax.numpy as jnp
from jax.experimental import pallas as pl
from jax.experimental.pallas import tpu as pltpu

# ----------------------------- config (cfgs) ---------------------------------
HIDDEN_SIZE = 32
ATTENTION_HEAD = 4
HEAD_DIM = HIDDEN_SIZE // ATTENTION_HEAD
FF_SIZE = 64
LAYER = 2
MAX_TOKEN = 8          # sequence length S
TOKEN_SIZE = 50
BATCH = 2
EPS_ATTN = 1e-6        # fast_transformers LinearAttention eps
EPS_LN = 1e-5          # torch.nn.LayerNorm eps


# ----------------------------- kernel helpers --------------------------------
def _layer_norm(x, g, b):
    mu = jnp.mean(x, axis=-1, keepdims=True)
    var = jnp.mean((x - mu) ** 2, axis=-1, keepdims=True)
    return (x - mu) * jax.lax.rsqrt(var + EPS_LN) * g + b


def _elu_plus_one(x):
    # feature map phi(x) = elu(x) + 1
    return jnp.where(x > 0, x + 1.0, jnp.exp(x))


# ------------------------------- the kernel ----------------------------------
def encoder_kernel(x_ref, pe_ref, kmask_ref, keep_ref,
                   wqkv_ref, bqkv_ref, wo_ref, bo_ref,
                   ln1g_ref, ln1b_ref, w1_ref, b1_ref, w2_ref, b2_ref,
                   ln2g_ref, ln2b_ref, lnfg_ref, lnfb_ref, bmask_ref,
                   out_ref):
    S, H, B = MAX_TOKEN, HIDDEN_SIZE, BATCH

    h = x_ref[...] + pe_ref[...]          # (B*S, H): embedding + positional enc
    kmask = kmask_ref[...]                # (B*S, 1): 1.0 for valid key positions
    bmask = bmask_ref[...]                # (H, H)  : block-diagonal head mask

    for l in range(LAYER):
        # ---------------- linear-attention sublayer ----------------
        # fused QKV projection: one (B*S, H) @ (H, 3H) matmul
        qkv = jnp.dot(h, wqkv_ref[l], preferred_element_type=jnp.float32) + bqkv_ref[l]
        q = _elu_plus_one(qkv[:, 0:H])                 # phi(Q), all heads at once
        k = _elu_plus_one(qkv[:, H:2 * H]) * kmask     # phi(K), length-masked
        v = qkv[:, 2 * H:3 * H]

        # per-sequence KV reduction; all heads at once via block-diagonal mask
        per_batch = []
        for b in range(B):
            r0 = b * S
            Qb = q[r0:r0 + S, :]                        # (S, H)
            Kb = k[r0:r0 + S, :]                        # (S, H)
            Vb = v[r0:r0 + S, :]                        # (S, H)
            # KV[d, m] = sum_s Kb[s, d] * Vb[s, m]; cross-head terms masked out
            KV = jax.lax.dot_general(Kb, Vb, (((0,), (0,)), ((), ())),
                                     preferred_element_type=jnp.float32) * bmask
            num = jnp.dot(Qb, KV, preferred_element_type=jnp.float32)     # (S, H)
            Ksum = jnp.sum(Kb, axis=0, keepdims=True)                     # (1, H)
            # den[s, d] = sum_{d' in head(d)} Qb[s, d'] * Ksum[d']  (+ eps)
            den = jnp.dot(Qb * Ksum, bmask,
                          preferred_element_type=jnp.float32) + EPS_ATTN  # (S, H)
            per_batch.append(num / den)
        attn_pre = jnp.concatenate(per_batch, axis=0)                     # (B*S, H)
        # fold the output projection once on the concatenated heads
        attn = jnp.dot(attn_pre, wo_ref[l],
                       preferred_element_type=jnp.float32) + bo_ref[l]

        # ---------------- post-norm transformer layer ----------------
        # x = x + attn ; y = x = norm1(x) ; y = relu(y W1 + b1) W2 + b2 ; out = norm2(x + y)
        x1 = h + attn
        x1n = _layer_norm(x1, ln1g_ref[l], ln1b_ref[l])
        y = jnp.maximum(
            jnp.dot(x1n, w1_ref[l], preferred_element_type=jnp.float32) + b1_ref[l],
            0.0)
        y = jnp.dot(y, w2_ref[l], preferred_element_type=jnp.float32) + b2_ref[l]
        h = _layer_norm(x1n + y, ln2g_ref[l], ln2b_ref[l])

    # final normalization of the encoder stack
    h = _layer_norm(h, lnfg_ref[...], lnfb_ref[...])

    # masked mean-pool over non-padding tokens: one (B, B*S) @ (B*S, H) matmul
    keep = keep_ref[...]                                              # (B, B*S)
    pooled = jnp.dot(keep, h, preferred_element_type=jnp.float32)     # (B, H)
    count = jnp.sum(keep, axis=-1, keepdims=True)                     # (B, 1)
    out_ref[...] = pooled / jnp.maximum(count, 1.0)                   # guard all-pad rows


# ----------------------------- wrapper / glue ---------------------------------
def _sinusoidal_pe(S, H):
    pos = jnp.arange(S, dtype=jnp.float32)[:, None]
    i = jnp.arange(0, H, 2, dtype=jnp.float32)
    div = jnp.exp(-i * (math.log(10000.0) / H))
    pe = jnp.zeros((S, H), jnp.float32)
    pe = pe.at[:, 0::2].set(jnp.sin(pos * div))
    pe = pe.at[:, 1::2].set(jnp.cos(pos * div))
    return pe


def _xavier(key, shape):
    fan_in, fan_out = shape[-2], shape[-1]
    limit = math.sqrt(6.0 / (fan_in + fan_out))
    return jax.random.uniform(key, shape, jnp.float32, -limit, limit)


def _bias(key, shape, fan_in):
    bound = 1.0 / math.sqrt(fan_in)
    return jax.random.uniform(key, shape, jnp.float32, -bound, bound)


def init_params(key):
    ks = jax.random.split(key, 16)
    L, H, F = LAYER, HIDDEN_SIZE, FF_SIZE
    p = {}
    p["embedding"] = jax.random.normal(ks[0], (TOKEN_SIZE, H), jnp.float32)
    p["pe"] = _sinusoidal_pe(MAX_TOKEN, H)
    # attention projections, stored in (in, out) layout; Q/K/V fused along out dim
    wq = _xavier(ks[1], (L, H, H)); bq = _bias(ks[2], (L, 1, H), H)
    wk = _xavier(ks[3], (L, H, H)); bk = _bias(ks[4], (L, 1, H), H)
    wv = _xavier(ks[5], (L, H, H)); bv = _bias(ks[6], (L, 1, H), H)
    p["wqkv"] = jnp.concatenate([wq, wk, wv], axis=-1)        # (L, H, 3H)
    p["bqkv"] = jnp.concatenate([bq, bk, bv], axis=-1)        # (L, 1, 3H)
    p["wo"] = _xavier(ks[7], (L, H, H)); p["bo"] = _bias(ks[8], (L, 1, H), H)
    # layer norms (torch default init: gamma=1, beta=0), stored as broadcast-ready rows
    p["ln1g"] = jnp.ones((L, 1, H), jnp.float32); p["ln1b"] = jnp.zeros((L, 1, H), jnp.float32)
    p["ln2g"] = jnp.ones((L, 1, H), jnp.float32); p["ln2b"] = jnp.zeros((L, 1, H), jnp.float32)
    p["lnfg"] = jnp.ones((1, H), jnp.float32);    p["lnfb"] = jnp.zeros((1, H), jnp.float32)
    # feed-forward
    p["w1"] = _xavier(ks[9], (L, H, F));  p["b1"] = _bias(ks[10], (L, 1, F), H)
    p["w2"] = _xavier(ks[11], (L, F, H)); p["b2"] = _bias(ks[12], (L, 1, H), F)
    # block-diagonal head mask: bmask[d, d'] = 1 iff d, d' belong to the same head
    head_id = jnp.arange(H) // HEAD_DIM
    p["bmask"] = (head_id[:, None] == head_id[None, :]).astype(jnp.float32)
    return p


def linear_encoder_classification(tokens, params):
    B, S = tokens.shape
    H = HIDDEN_SIZE
    assert S == MAX_TOKEN and B == BATCH

    # ---- plain-JAX glue: embedding gather + masks (matches the torch code) ----
    emb = params["embedding"][tokens].astype(jnp.float32).reshape(B * S, H)   # (B*S, H)
    pe_t = jnp.tile(params["pe"], (B, 1))                                     # (B*S, H)

    lengths = jnp.sum((jnp.abs(tokens) != 0).astype(jnp.int32), -1)           # (B,)
    length_mask = (jnp.arange(S)[None, :] < lengths[:, None]).astype(jnp.float32)
    kmask = length_mask.reshape(B * S, 1)                                     # key mask

    # pooling matrix: keep[b, b*S + s] = 1.0 iff token (b, s) is non-padding
    keep_rows = (tokens != 0).astype(jnp.float32)                             # (B, S)
    keep = (jnp.eye(B, dtype=jnp.float32)[:, :, None]
            * keep_rows[None, :, :]).reshape(B, B * S)                        # (B, B*S)

    vmem = pl.BlockSpec(memory_space=pltpu.MemorySpace.VMEM)
    inputs = (emb, pe_t, kmask, keep,
              params["wqkv"], params["bqkv"], params["wo"], params["bo"],
              params["ln1g"], params["ln1b"], params["w1"], params["b1"],
              params["w2"], params["b2"], params["ln2g"], params["ln2b"],
              params["lnfg"], params["lnfb"], params["bmask"])

    # single invocation for the whole batch: no grid, everything resident in VMEM
    out = pl.pallas_call(
        encoder_kernel,
        out_shape=jax.ShapeDtypeStruct((B, H), jnp.float32),
        in_specs=[vmem] * len(inputs),
        out_specs=vmem,
    )(*inputs)

    return out   # (B, H) pooled sentence representation


# ----------------------------------- main -------------------------------------
if __name__ == "__main__":
    key = jax.random.PRNGKey(0)
    pkey, tkey = jax.random.split(key)

    params = init_params(pkey)

    # token ids with trailing zero-padding (0 == pad token, as in the module)
    tokens = jax.random.randint(tkey, (BATCH, MAX_TOKEN), 1, TOKEN_SIZE, dtype=jnp.int32)
    seq_lens = jnp.array([MAX_TOKEN, 5], dtype=jnp.int32)
    tokens = jnp.where(jnp.arange(MAX_TOKEN)[None, :] < seq_lens[:, None], tokens, 0)

    avg_x = linear_encoder_classification(tokens, params)
    jax.block_until_ready(avg_x)

    assert avg_x.shape == (BATCH, HIDDEN_SIZE)
    assert bool(jnp.all(jnp.isfinite(avg_x)))
    print("KERNEL_OK")
</pallas_src>

<mosaic_0001>
module attributes {stable_mosaic.version = 11 : i64} {
  func.func @encoder_kernel(%arg0: memref<16x32xf32, #tpu.memory_space<vmem>>, %arg1: memref<16x32xf32, #tpu.memory_space<vmem>>, %arg2: memref<16x1xf32, #tpu.memory_space<vmem>>, %arg3: memref<2x16xf32, #tpu.memory_space<vmem>>, %arg4: memref<2x32x96xf32, #tpu.memory_space<vmem>>, %arg5: memref<2x1x96xf32, #tpu.memory_space<vmem>>, %arg6: memref<2x32x32xf32, #tpu.memory_space<vmem>>, %arg7: memref<2x1x32xf32, #tpu.memory_space<vmem>>, %arg8: memref<2x1x32xf32, #tpu.memory_space<vmem>>, %arg9: memref<2x1x32xf32, #tpu.memory_space<vmem>>, %arg10: memref<2x32x64xf32, #tpu.memory_space<vmem>>, %arg11: memref<2x1x64xf32, #tpu.memory_space<vmem>>, %arg12: memref<2x64x32xf32, #tpu.memory_space<vmem>>, %arg13: memref<2x1x32xf32, #tpu.memory_space<vmem>>, %arg14: memref<2x1x32xf32, #tpu.memory_space<vmem>>, %arg15: memref<2x1x32xf32, #tpu.memory_space<vmem>>, %arg16: memref<1x32xf32, #tpu.memory_space<vmem>>, %arg17: memref<1x32xf32, #tpu.memory_space<vmem>>, %arg18: memref<32x32xf32, #tpu.memory_space<vmem>>, %arg19: memref<2x32xf32, #tpu.memory_space<vmem>>) attributes {dimension_semantics = [], scalar_prefetch = 0 : i64, scratch_operands = 0 : i64, tpu.core_type = #tpu.core_type<tc>} {
    %c0 = arith.constant 0 : index
    %c0_0 = arith.constant 0 : index
    %0 = vector.load %arg0[%c0, %c0_0] : memref<16x32xf32, #tpu.memory_space<vmem>>, vector<16x32xf32>
    %c0_1 = arith.constant 0 : index
    %c0_2 = arith.constant 0 : index
    %1 = vector.load %arg1[%c0_1, %c0_2] : memref<16x32xf32, #tpu.memory_space<vmem>>, vector<16x32xf32>
    %2 = arith.addf %0, %1 : vector<16x32xf32>
    %c0_3 = arith.constant 0 : index
    %c0_4 = arith.constant 0 : index
    %3 = vector.load %arg2[%c0_3, %c0_4] : memref<16x1xf32, #tpu.memory_space<vmem>>, vector<16x1xf32>
    %c0_5 = arith.constant 0 : index
    %c0_6 = arith.constant 0 : index
    %4 = vector.load %arg18[%c0_5, %c0_6] : memref<32x32xf32, #tpu.memory_space<vmem>>, vector<32x32xf32>
    %c0_7 = arith.constant 0 : index
    %c0_8 = arith.constant 0 : index
    %c0_9 = arith.constant 0 : index
    %5 = vector.load %arg4[%c0_7, %c0_8, %c0_9] : memref<2x32x96xf32, #tpu.memory_space<vmem>>, vector<1x32x96xf32>
    %6 = vector.shape_cast %5 : vector<1x32x96xf32> to vector<32x96xf32>
    %cst = arith.constant dense<0.000000e+00> : vector<16x96xf32>
    %7 = tpu.matmul %2, %6, %cst {dimension_numbers = #tpu.dot_dimension_numbers<[1], [0], [0], [1], [0, 0, 1, 1], [], []>} : vector<16x32xf32>, vector<32x96xf32>, vector<16x96xf32> -> vector<16x96xf32>
    %c0_10 = arith.constant 0 : index
    %c0_11 = arith.constant 0 : index
    %c0_12 = arith.constant 0 : index
    %8 = vector.load %arg5[%c0_10, %c0_11, %c0_12] : memref<2x1x96xf32, #tpu.memory_space<vmem>>, vector<1x1x96xf32>
    %9 = vector.shape_cast %8 : vector<1x1x96xf32> to vector<1x96xf32>
    %10 = vector.broadcast %9 : vector<1x96xf32> to vector<16x96xf32>
    %11 = arith.addf %7, %10 : vector<16x96xf32>
    %12 = vector.extract_strided_slice %11 {offsets = [0, 0], sizes = [16, 32], strides = [1, 1]} : vector<16x96xf32> to vector<16x32xf32>
    %cst_13 = arith.constant 0.000000e+00 : f32
    %13 = vector.broadcast %cst_13 : f32 to vector<16x32xf32>
    %14 = arith.cmpf ogt, %12, %13 : vector<16x32xf32>
    %cst_14 = arith.constant 1.000000e+00 : f32
    %15 = vector.broadcast %cst_14 : f32 to vector<16x32xf32>
    %16 = arith.addf %12, %15 : vector<16x32xf32>
    %17 = math.exp %12 : vector<16x32xf32>
    %18 = arith.select %14, %16, %17 : vector<16x32xi1>, vector<16x32xf32>
    %19 = vector.extract_strided_slice %11 {offsets = [0, 32], sizes = [16, 32], strides = [1, 1]} : vector<16x96xf32> to vector<16x32xf32>
    %cst_15 = arith.constant 0.000000e+00 : f32
    %20 = vector.broadcast %cst_15 : f32 to vector<16x32xf32>
    %21 = arith.cmpf ogt, %19, %20 : vector<16x32xf32>
    %cst_16 = arith.constant 1.000000e+00 : f32
    %22 = vector.broadcast %cst_16 : f32 to vector<16x32xf32>
    %23 = arith.addf %19, %22 : vector<16x32xf32>
    %24 = math.exp %19 : vector<16x32xf32>
    %25 = arith.select %21, %23, %24 : vector<16x32xi1>, vector<16x32xf32>
    %26 = vector.broadcast %3 : vector<16x1xf32> to vector<16x32xf32>
    %27 = arith.mulf %25, %26 : vector<16x32xf32>
    %28 = vector.extract_strided_slice %11 {offsets = [0, 64], sizes = [16, 32], strides = [1, 1]} : vector<16x96xf32> to vector<16x32xf32>
    %29 = vector.extract_strided_slice %18 {offsets = [0, 0], sizes = [8, 32], strides = [1, 1]} : vector<16x32xf32> to vector<8x32xf32>
    %30 = vector.extract_strided_slice %27 {offsets = [0, 0], sizes = [8, 32], strides = [1, 1]} : vector<16x32xf32> to vector<8x32xf32>
    %31 = vector.extract_strided_slice %28 {offsets = [0, 0], sizes = [8, 32], strides = [1, 1]} : vector<16x32xf32> to vector<8x32xf32>
    %cst_17 = arith.constant dense<0.000000e+00> : vector<32x32xf32>
    %32 = tpu.matmul %30, %31, %cst_17 {dimension_numbers = #tpu.dot_dimension_numbers<[0], [0], [1], [1], [0, 1, 1, 1], [], []>} : vector<8x32xf32>, vector<8x32xf32>, vector<32x32xf32> -> vector<32x32xf32>
    %33 = arith.mulf %32, %4 : vector<32x32xf32>
    %cst_18 = arith.constant dense<0.000000e+00> : vector<8x32xf32>
    %34 = tpu.matmul %29, %33, %cst_18 {dimension_numbers = #tpu.dot_dimension_numbers<[1], [0], [0], [1], [0, 0, 1, 1], [], []>} : vector<8x32xf32>, vector<32x32xf32>, vector<8x32xf32> -> vector<8x32xf32>
    %cst_19 = arith.constant dense<0.000000e+00> : vector<32xf32>
    %35 = vector.multi_reduction <add>, %30, %cst_19 [0] : vector<8x32xf32> to vector<32xf32>
    %36 = vector.shape_cast %35 : vector<32xf32> to vector<1x32xf32>
    %37 = vector.broadcast %36 : vector<1x32xf32> to vector<8x32xf32>
    %38 = arith.mulf %29, %37 : vector<8x32xf32>
    %cst_20 = arith.constant dense<0.000000e+00> : vector<8x32xf32>
    %39 = tpu.matmul %38, %4, %cst_20 {dimension_numbers = #tpu.dot_dimension_numbers<[1], [0], [0], [1], [0, 0, 1, 1], [], []>} : vector<8x32xf32>, vector<32x32xf32>, vector<8x32xf32> -> vector<8x32xf32>
    %cst_21 = arith.constant 9.99999997E-7 : f32
    %40 = vector.broadcast %cst_21 : f32 to vector<8x32xf32>
    %41 = arith.addf %39, %40 : vector<8x32xf32>
    %42 = arith.divf %34, %41 : vector<8x32xf32>
    %43 = vector.extract_strided_slice %18 {offsets = [8, 0], sizes = [8, 32], strides = [1, 1]} : vector<16x32xf32> to vector<8x32xf32>
    %44 = vector.extract_strided_slice %27 {offsets = [8, 0], sizes = [8, 32], strides = [1, 1]} : vector<16x32xf32> to vector<8x32xf32>
    %45 = vector.extract_strided_slice %28 {offsets = [8, 0], sizes = [8, 32], strides = [1, 1]} : vector<16x32xf32> to vector<8x32xf32>
    %cst_22 = arith.constant dense<0.000000e+00> : vector<32x32xf32>
    %46 = tpu.matmul %44, %45, %cst_22 {dimension_numbers = #tpu.dot_dimension_numbers<[0], [0], [1], [1], [0, 1, 1, 1], [], []>} : vector<8x32xf32>, vector<8x32xf32>, vector<32x32xf32> -> vector<32x32xf32>
    %47 = arith.mulf %46, %4 : vector<32x32xf32>
    %cst_23 = arith.constant dense<0.000000e+00> : vector<8x32xf32>
    %48 = tpu.matmul %43, %47, %cst_23 {dimension_numbers = #tpu.dot_dimension_numbers<[1], [0], [0], [1], [0, 0, 1, 1], [], []>} : vector<8x32xf32>, vector<32x32xf32>, vector<8x32xf32> -> vector<8x32xf32>
    %cst_24 = arith.constant dense<0.000000e+00> : vector<32xf32>
    %49 = vector.multi_reduction <add>, %44, %cst_24 [0] : vector<8x32xf32> to vector<32xf32>
    %50 = vector.shape_cast %49 : vector<32xf32> to vector<1x32xf32>
    %51 = vector.broadcast %50 : vector<1x32xf32> to vector<8x32xf32>
    %52 = arith.mulf %43, %51 : vector<8x32xf32>
    %cst_25 = arith.constant dense<0.000000e+00> : vector<8x32xf32>
    %53 = tpu.matmul %52, %4, %cst_25 {dimension_numbers = #tpu.dot_dimension_numbers<[1], [0], [0], [1], [0, 0, 1, 1], [], []>} : vector<8x32xf32>, vector<32x32xf32>, vector<8x32xf32> -> vector<8x32xf32>
    %cst_26 = arith.constant 9.99999997E-7 : f32
    %54 = vector.broadcast %cst_26 : f32 to vector<8x32xf32>
    %55 = arith.addf %53, %54 : vector<8x32xf32>
    %56 = arith.divf %48, %55 : vector<8x32xf32>
    %57 = tpu.concatenate %42, %56 in 0 : vector<8x32xf32>, vector<8x32xf32> -> vector<16x32xf32>
    %c0_27 = arith.constant 0 : index
    %c0_28 = arith.constant 0 : index
    %c0_29 = arith.constant 0 : index
    %58 = vector.load %arg6[%c0_27, %c0_28, %c0_29] : memref<2x32x32xf32, #tpu.memory_space<vmem>>, vector<1x32x32xf32>
    %59 = vector.shape_cast %58 : vector<1x32x32xf32> to vector<32x32xf32>
    %cst_30 = arith.constant dense<0.000000e+00> : vector<16x32xf32>
    %60 = tpu.matmul %57, %59, %cst_30 {dimension_numbers = #tpu.dot_dimension_numbers<[1], [0], [0], [1], [0, 0, 1, 1], [], []>} : vector<16x32xf32>, vector<32x32xf32>, vector<16x32xf32> -> vector<16x32xf32>
    %c0_31 = arith.constant 0 : index
    %c0_32 = arith.constant 0 : index
    %c0_33 = arith.constant 0 : index
    %61 = vector.load %arg7[%c0_31, %c0_32, %c0_33] : memref<2x1x32xf32, #tpu.memory_space<vmem>>, vector<1x1x32xf32>
    %62 = vector.shape_cast %61 : vector<1x1x32xf32> to vector<1x32xf32>
    %63 = vector.broadcast %62 : vector<1x32xf32> to vector<16x32xf32>
    %64 = arith.addf %60, %63 : vector<16x32xf32>
    %65 = arith.addf %2, %64 : vector<16x32xf32>
    %c0_34 = arith.constant 0 : index
    %c0_35 = arith.constant 0 : index
    %c0_36 = arith.constant 0 : index
    %66 = vector.load %arg8[%c0_34, %c0_35, %c0_36] : memref<2x1x32xf32, #tpu.memory_space<vmem>>, vector<1x1x32xf32>
    %67 = vector.shape_cast %66 : vector<1x1x32xf32> to vector<1x32xf32>
    %c0_37 = arith.constant 0 : index
    %c0_38 = arith.constant 0 : index
    %c0_39 = arith.constant 0 : index
    %68 = vector.load %arg9[%c0_37, %c0_38, %c0_39] : memref<2x1x32xf32, #tpu.memory_space<vmem>>, vector<1x1x32xf32>
    %69 = vector.shape_cast %68 : vector<1x1x32xf32> to vector<1x32xf32>
    %cst_40 = arith.constant dense<0.000000e+00> : vector<16xf32>
    %70 = vector.multi_reduction <add>, %65, %cst_40 [1] : vector<16x32xf32> to vector<16xf32>
    %71 = vector.shape_cast %70 : vector<16xf32> to vector<16x1xf32>
    %cst_41 = arith.constant 3.200000e+01 : f32
    %72 = vector.broadcast %cst_41 : f32 to vector<16x1xf32>
    %73 = arith.divf %71, %72 : vector<16x1xf32>
    %74 = vector.broadcast %73 : vector<16x1xf32> to vector<16x32xf32>
    %75 = arith.subf %65, %74 : vector<16x32xf32>
    %76 = arith.mulf %75, %75 : vector<16x32xf32>
    %cst_42 = arith.constant dense<0.000000e+00> : vector<16xf32>
    %77 = vector.multi_reduction <add>, %76, %cst_42 [1] : vector<16x32xf32> to vector<16xf32>
    %78 = vector.shape_cast %77 : vector<16xf32> to vector<16x1xf32>
    %cst_43 = arith.constant 3.200000e+01 : f32
    %79 = vector.broadcast %cst_43 : f32 to vector<16x1xf32>
    %80 = arith.divf %78, %79 : vector<16x1xf32>
    %81 = vector.broadcast %73 : vector<16x1xf32> to vector<16x32xf32>
    %82 = arith.subf %65, %81 : vector<16x32xf32>
    %cst_44 = arith.constant 9.99999974E-6 : f32
    %83 = vector.broadcast %cst_44 : f32 to vector<16x1xf32>
    %84 = arith.addf %80, %83 : vector<16x1xf32>
    %85 = math.rsqrt %84 : vector<16x1xf32>
    %86 = vector.broadcast %85 : vector<16x1xf32> to vector<16x32xf32>
    %87 = arith.mulf %82, %86 : vector<16x32xf32>
    %88 = vector.broadcast %67 : vector<1x32xf32> to vector<16x32xf32>
    %89 = arith.mulf %87, %88 : vector<16x32xf32>
    %90 = vector.broadcast %69 : vector<1x32xf32> to vector<16x32xf32>
    %91 = arith.addf %89, %90 : vector<16x32xf32>
    %c0_45 = arith.constant 0 : index
    %c0_46 = arith.constant 0 : index
    %c0_47 = arith.constant 0 : index
    %92 = vector.load %arg10[%c0_45, %c0_46, %c0_47] : memref<2x32x64xf32, #tpu.memory_space<vmem>>, vector<1x32x64xf32>
    %93 = vector.shape_cast %92 : vector<1x32x64xf32> to vector<32x64xf32>
    %cst_48 = arith.constant dense<0.000000e+00> : vector<16x64xf32>
    %94 = tpu.matmul %91, %93, %cst_48 {dimension_numbers = #tpu.dot_dimension_numbers<[1], [0], [0], [1], [0, 0, 1, 1], [], []>} : vector<16x32xf32>, vector<32x64xf32>, vector<16x64xf32> -> vector<16x64xf32>
    %c0_49 = arith.constant 0 : index
    %c0_50 = arith.constant 0 : index
    %c0_51 = arith.constant 0 : index
    %95 = vector.load %arg11[%c0_49, %c0_50, %c0_51] : memref<2x1x64xf32, #tpu.memory_space<vmem>>, vector<1x1x64xf32>
    %96 = vector.shape_cast %95 : vector<1x1x64xf32> to vector<1x64xf32>
    %97 = vector.broadcast %96 : vector<1x64xf32> to vector<16x64xf32>
    %98 = arith.addf %94, %97 : vector<16x64xf32>
    %cst_52 = arith.constant 0.000000e+00 : f32
    %99 = vector.broadcast %cst_52 : f32 to vector<16x64xf32>
    %100 = arith.maximumf %98, %99 : vector<16x64xf32>
    %c0_53 = arith.constant 0 : index
    %c0_54 = arith.constant 0 : index
    %c0_55 = arith.constant 0 : index
    %101 = vector.load %arg12[%c0_53, %c0_54, %c0_55] : memref<2x64x32xf32, #tpu.memory_space<vmem>>, vector<1x64x32xf32>
    %102 = vector.shape_cast %101 : vector<1x64x32xf32> to vector<64x32xf32>
    %cst_56 = arith.constant dense<0.000000e+00> : vector<16x32xf32>
    %103 = tpu.matmul %100, %102, %cst_56 {dimension_numbers = #tpu.dot_dimension_numbers<[1], [0], [0], [1], [0, 0, 1, 1], [], []>} : vector<16x64xf32>, vector<64x32xf32>, vector<16x32xf32> -> vector<16x32xf32>
    %c0_57 = arith.constant 0 : index
    %c0_58 = arith.constant 0 : index
    %c0_59 = arith.constant 0 : index
    %104 = vector.load %arg13[%c0_57, %c0_58, %c0_59] : memref<2x1x32xf32, #tpu.memory_space<vmem>>, vector<1x1x32xf32>
    %105 = vector.shape_cast %104 : vector<1x1x32xf32> to vector<1x32xf32>
    %106 = vector.broadcast %105 : vector<1x32xf32> to vector<16x32xf32>
    %107 = arith.addf %103, %106 : vector<16x32xf32>
    %108 = arith.addf %91, %107 : vector<16x32xf32>
    %c0_60 = arith.constant 0 : index
    %c0_61 = arith.constant 0 : index
    %c0_62 = arith.constant 0 : index
    %109 = vector.load %arg14[%c0_60, %c0_61, %c0_62] : memref<2x1x32xf32, #tpu.memory_space<vmem>>, vector<1x1x32xf32>
    %110 = vector.shape_cast %109 : vector<1x1x32xf32> to vector<1x32xf32>
    %c0_63 = arith.constant 0 : index
    %c0_64 = arith.constant 0 : index
    %c0_65 = arith.constant 0 : index
    %111 = vector.load %arg15[%c0_63, %c0_64, %c0_65] : memref<2x1x32xf32, #tpu.memory_space<vmem>>, vector<1x1x32xf32>
    %112 = vector.shape_cast %111 : vector<1x1x32xf32> to vector<1x32xf32>
    %cst_66 = arith.constant dense<0.000000e+00> : vector<16xf32>
    %113 = vector.multi_reduction <add>, %108, %cst_66 [1] : vector<16x32xf32> to vector<16xf32>
    %114 = vector.shape_cast %113 : vector<16xf32> to vector<16x1xf32>
    %cst_67 = arith.constant 3.200000e+01 : f32
    %115 = vector.broadcast %cst_67 : f32 to vector<16x1xf32>
    %116 = arith.divf %114, %115 : vector<16x1xf32>
    %117 = vector.broadcast %116 : vector<16x1xf32> to vector<16x32xf32>
    %118 = arith.subf %108, %117 : vector<16x32xf32>
    %119 = arith.mulf %118, %118 : vector<16x32xf32>
    %cst_68 = arith.constant dense<0.000000e+00> : vector<16xf32>
    %120 = vector.multi_reduction <add>, %119, %cst_68 [1] : vector<16x32xf32> to vector<16xf32>
    %121 = vector.shape_cast %120 : vector<16xf32> to vector<16x1xf32>
    %cst_69 = arith.constant 3.200000e+01 : f32
    %122 = vector.broadcast %cst_69 : f32 to vector<16x1xf32>
    %123 = arith.divf %121, %122 : vector<16x1xf32>
    %124 = vector.broadcast %116 : vector<16x1xf32> to vector<16x32xf32>
    %125 = arith.subf %108, %124 : vector<16x32xf32>
    %cst_70 = arith.constant 9.99999974E-6 : f32
    %126 = vector.broadcast %cst_70 : f32 to vector<16x1xf32>
    %127 = arith.addf %123, %126 : vector<16x1xf32>
    %128 = math.rsqrt %127 : vector<16x1xf32>
    %129 = vector.broadcast %128 : vector<16x1xf32> to vector<16x32xf32>
    %130 = arith.mulf %125, %129 : vector<16x32xf32>
    %131 = vector.broadcast %110 : vector<1x32xf32> to vector<16x32xf32>
    %132 = arith.mulf %130, %131 : vector<16x32xf32>
    %133 = vector.broadcast %112 : vector<1x32xf32> to vector<16x32xf32>
    %134 = arith.addf %132, %133 : vector<16x32xf32>
    %c1 = arith.constant 1 : index
    %c0_71 = arith.constant 0 : index
    %c0_72 = arith.constant 0 : index
    %135 = vector.load %arg4[%c1, %c0_71, %c0_72] : memref<2x32x96xf32, #tpu.memory_space<vmem>>, vector<1x32x96xf32>
    %136 = vector.shape_cast %135 : vector<1x32x96xf32> to vector<32x96xf32>
    %cst_73 = arith.constant dense<0.000000e+00> : vector<16x96xf32>
    %137 = tpu.matmul %134, %136, %cst_73 {dimension_numbers = #tpu.dot_dimension_numbers<[1], [0], [0], [1], [0, 0, 1, 1], [], []>} : vector<16x32xf32>, vector<32x96xf32>, vector<16x96xf32> -> vector<16x96xf32>
    %c1_74 = arith.constant 1 : index
    %c0_75 = arith.constant 0 : index
    %c0_76 = arith.constant 0 : index
    %138 = vector.load %arg5[%c1_74, %c0_75, %c0_76] : memref<2x1x96xf32, #tpu.memory_space<vmem>>, vector<1x1x96xf32>
    %139 = vector.shape_cast %138 : vector<1x1x96xf32> to vector<1x96xf32>
    %140 = vector.broadcast %139 : vector<1x96xf32> to vector<16x96xf32>
    %141 = arith.addf %137, %140 : vector<16x96xf32>
    %142 = vector.extract_strided_slice %141 {offsets = [0, 0], sizes = [16, 32], strides = [1, 1]} : vector<16x96xf32> to vector<16x32xf32>
    %cst_77 = arith.constant 0.000000e+00 : f32
    %143 = vector.broadcast %cst_77 : f32 to vector<16x32xf32>
    %144 = arith.cmpf ogt, %142, %143 : vector<16x32xf32>
    %cst_78 = arith.constant 1.000000e+00 : f32
    %145 = vector.broadcast %cst_78 : f32 to vector<16x32xf32>
    %146 = arith.addf %142, %145 : vector<16x32xf32>
    %147 = math.exp %142 : vector<16x32xf32>
    %148 = arith.select %144, %146, %147 : vector<16x32xi1>, vector<16x32xf32>
    %149 = vector.extract_strided_slice %141 {offsets = [0, 32], sizes = [16, 32], strides = [1, 1]} : vector<16x96xf32> to vector<16x32xf32>
    %cst_79 = arith.constant 0.000000e+00 : f32
    %150 = vector.broadcast %cst_79 : f32 to vector<16x32xf32>
    %151 = arith.cmpf ogt, %149, %150 : vector<16x32xf32>
    %cst_80 = arith.constant 1.000000e+00 : f32
    %152 = vector.broadcast %cst_80 : f32 to vector<16x32xf32>
    %153 = arith.addf %149, %152 : vector<16x32xf32>
    %154 = math.exp %149 : vector<16x32xf32>
    %155 = arith.select %151, %153, %154 : vector<16x32xi1>, vector<16x32xf32>
    %156 = vector.broadcast %3 : vector<16x1xf32> to vector<16x32xf32>
    %157 = arith.mulf %155, %156 : vector<16x32xf32>
    %158 = vector.extract_strided_slice %141 {offsets = [0, 64], sizes = [16, 32], strides = [1, 1]} : vector<16x96xf32> to vector<16x32xf32>
    %159 = vector.extract_strided_slice %148 {offsets = [0, 0], sizes = [8, 32], strides = [1, 1]} : vector<16x32xf32> to vector<8x32xf32>
    %160 = vector.extract_strided_slice %157 {offsets = [0, 0], sizes = [8, 32], strides = [1, 1]} : vector<16x32xf32> to vector<8x32xf32>
    %161 = vector.extract_strided_slice %158 {offsets = [0, 0], sizes = [8, 32], strides = [1, 1]} : vector<16x32xf32> to vector<8x32xf32>
    %cst_81 = arith.constant dense<0.000000e+00> : vector<32x32xf32>
    %162 = tpu.matmul %160, %161, %cst_81 {dimension_numbers = #tpu.dot_dimension_numbers<[0], [0], [1], [1], [0, 1, 1, 1], [], []>} : vector<8x32xf32>, vector<8x32xf32>, vector<32x32xf32> -> vector<32x32xf32>
    %163 = arith.mulf %162, %4 : vector<32x32xf32>
    %cst_82 = arith.constant dense<0.000000e+00> : vector<8x32xf32>
    %164 = tpu.matmul %159, %163, %cst_82 {dimension_numbers = #tpu.dot_dimension_numbers<[1], [0], [0], [1], [0, 0, 1, 1], [], []>} : vector<8x32xf32>, vector<32x32xf32>, vector<8x32xf32> -> vector<8x32xf32>
    %cst_83 = arith.constant dense<0.000000e+00> : vector<32xf32>
    %165 = vector.multi_reduction <add>, %160, %cst_83 [0] : vector<8x32xf32> to vector<32xf32>
    %166 = vector.shape_cast %165 : vector<32xf32> to vector<1x32xf32>
    %167 = vector.broadcast %166 : vector<1x32xf32> to vector<8x32xf32>
    %168 = arith.mulf %159, %167 : vector<8x32xf32>
    %cst_84 = arith.constant dense<0.000000e+00> : vector<8x32xf32>
    %169 = tpu.matmul %168, %4, %cst_84 {dimension_numbers = #tpu.dot_dimension_numbers<[1], [0], [0], [1], [0, 0, 1, 1], [], []>} : vector<8x32xf32>, vector<32x32xf32>, vector<8x32xf32> -> vector<8x32xf32>
    %cst_85 = arith.constant 9.99999997E-7 : f32
    %170 = vector.broadcast %cst_85 : f32 to vector<8x32xf32>
    %171 = arith.addf %169, %170 : vector<8x32xf32>
    %172 = arith.divf %164, %171 : vector<8x32xf32>
    %173 = vector.extract_strided_slice %148 {offsets = [8, 0], sizes = [8, 32], strides = [1, 1]} : vector<16x32xf32> to vector<8x32xf32>
    %174 = vector.extract_strided_slice %157 {offsets = [8, 0], sizes = [8, 32], strides = [1, 1]} : vector<16x32xf32> to vector<8x32xf32>
    %175 = vector.extract_strided_slice %158 {offsets = [8, 0], sizes = [8, 32], strides = [1, 1]} : vector<16x32xf32> to vector<8x32xf32>
    %cst_86 = arith.constant dense<0.000000e+00> : vector<32x32xf32>
    %176 = tpu.matmul %174, %175, %cst_86 {dimension_numbers = #tpu.dot_dimension_numbers<[0], [0], [1], [1], [0, 1, 1, 1], [], []>} : vector<8x32xf32>, vector<8x32xf32>, vector<32x32xf32> -> vector<32x32xf32>
    %177 = arith.mulf %176, %4 : vector<32x32xf32>
    %cst_87 = arith.constant dense<0.000000e+00> : vector<8x32xf32>
    %178 = tpu.matmul %173, %177, %cst_87 {dimension_numbers = #tpu.dot_dimension_numbers<[1], [0], [0], [1], [0, 0, 1, 1], [], []>} : vector<8x32xf32>, vector<32x32xf32>, vector<8x32xf32> -> vector<8x32xf32>
    %cst_88 = arith.constant dense<0.000000e+00> : vector<32xf32>
    %179 = vector.multi_reduction <add>, %174, %cst_88 [0] : vector<8x32xf32> to vector<32xf32>
    %180 = vector.shape_cast %179 : vector<32xf32> to vector<1x32xf32>
    %181 = vector.broadcast %180 : vector<1x32xf32> to vector<8x32xf32>
    %182 = arith.mulf %173, %181 : vector<8x32xf32>
    %cst_89 = arith.constant dense<0.000000e+00> : vector<8x32xf32>
    %183 = tpu.matmul %182, %4, %cst_89 {dimension_numbers = #tpu.dot_dimension_numbers<[1], [0], [0], [1], [0, 0, 1, 1], [], []>} : vector<8x32xf32>, vector<32x32xf32>, vector<8x32xf32> -> vector<8x32xf32>
    %cst_90 = arith.constant 9.99999997E-7 : f32
    %184 = vector.broadcast %cst_90 : f32 to vector<8x32xf32>
    %185 = arith.addf %183, %184 : vector<8x32xf32>
    %186 = arith.divf %178, %185 : vector<8x32xf32>
    %187 = tpu.concatenate %172, %186 in 0 : vector<8x32xf32>, vector<8x32xf32> -> vector<16x32xf32>
    %c1_91 = arith.constant 1 : index
    %c0_92 = arith.constant 0 : index
    %c0_93 = arith.constant 0 : index
    %188 = vector.load %arg6[%c1_91, %c0_92, %c0_93] : memref<2x32x32xf32, #tpu.memory_space<vmem>>, vector<1x32x32xf32>
    %189 = vector.shape_cast %188 : vector<1x32x32xf32> to vector<32x32xf32>
    %cst_94 = arith.constant dense<0.000000e+00> : vector<16x32xf32>
    %190 = tpu.matmul %187, %189, %cst_94 {dimension_numbers = #tpu.dot_dimension_numbers<[1], [0], [0], [1], [0, 0, 1, 1], [], []>} : vector<16x32xf32>, vector<32x32xf32>, vector<16x32xf32> -> vector<16x32xf32>
    %c1_95 = arith.constant 1 : index
    %c0_96 = arith.constant 0 : index
    %c0_97 = arith.constant 0 : index
    %191 = vector.load %arg7[%c1_95, %c0_96, %c0_97] : memref<2x1x32xf32, #tpu.memory_space<vmem>>, vector<1x1x32xf32>
    %192 = vector.shape_cast %191 : vector<1x1x32xf32> to vector<1x32xf32>
    %193 = vector.broadcast %192 : vector<1x32xf32> to vector<16x32xf32>
    %194 = arith.addf %190, %193 : vector<16x32xf32>
    %195 = arith.addf %134, %194 : vector<16x32xf32>
    %c1_98 = arith.constant 1 : index
    %c0_99 = arith.constant 0 : index
    %c0_100 = arith.constant 0 : index
    %196 = vector.load %arg8[%c1_98, %c0_99, %c0_100] : memref<2x1x32xf32, #tpu.memory_space<vmem>>, vector<1x1x32xf32>
    %197 = vector.shape_cast %196 : vector<1x1x32xf32> to vector<1x32xf32>
    %c1_101 = arith.constant 1 : index
    %c0_102 = arith.constant 0 : index
    %c0_103 = arith.constant 0 : index
    %198 = vector.load %arg9[%c1_101, %c0_102, %c0_103] : memref<2x1x32xf32, #tpu.memory_space<vmem>>, vector<1x1x32xf32>
    %199 = vector.shape_cast %198 : vector<1x1x32xf32> to vector<1x32xf32>
    %cst_104 = arith.constant dense<0.000000e+00> : vector<16xf32>
    %200 = vector.multi_reduction <add>, %195, %cst_104 [1] : vector<16x32xf32> to vector<16xf32>
    %201 = vector.shape_cast %200 : vector<16xf32> to vector<16x1xf32>
    %cst_105 = arith.constant 3.200000e+01 : f32
    %202 = vector.broadcast %cst_105 : f32 to vector<16x1xf32>
    %203 = arith.divf %201, %202 : vector<16x1xf32>
    %204 = vector.broadcast %203 : vector<16x1xf32> to vector<16x32xf32>
    %205 = arith.subf %195, %204 : vector<16x32xf32>
    %206 = arith.mulf %205, %205 : vector<16x32xf32>
    %cst_106 = arith.constant dense<0.000000e+00> : vector<16xf32>
    %207 = vector.multi_reduction <add>, %206, %cst_106 [1] : vector<16x32xf32> to vector<16xf32>
    %208 = vector.shape_cast %207 : vector<16xf32> to vector<16x1xf32>
    %cst_107 = arith.constant 3.200000e+01 : f32
    %209 = vector.broadcast %cst_107 : f32 to vector<16x1xf32>
    %210 = arith.divf %208, %209 : vector<16x1xf32>
    %211 = vector.broadcast %203 : vector<16x1xf32> to vector<16x32xf32>
    %212 = arith.subf %195, %211 : vector<16x32xf32>
    %cst_108 = arith.constant 9.99999974E-6 : f32
    %213 = vector.broadcast %cst_108 : f32 to vector<16x1xf32>
    %214 = arith.addf %210, %213 : vector<16x1xf32>
    %215 = math.rsqrt %214 : vector<16x1xf32>
    %216 = vector.broadcast %215 : vector<16x1xf32> to vector<16x32xf32>
    %217 = arith.mulf %212, %216 : vector<16x32xf32>
    %218 = vector.broadcast %197 : vector<1x32xf32> to vector<16x32xf32>
    %219 = arith.mulf %217, %218 : vector<16x32xf32>
    %220 = vector.broadcast %199 : vector<1x32xf32> to vector<16x32xf32>
    %221 = arith.addf %219, %220 : vector<16x32xf32>
    %c1_109 = arith.constant 1 : index
    %c0_110 = arith.constant 0 : index
    %c0_111 = arith.constant 0 : index
    %222 = vector.load %arg10[%c1_109, %c0_110, %c0_111] : memref<2x32x64xf32, #tpu.memory_space<vmem>>, vector<1x32x64xf32>
    %223 = vector.shape_cast %222 : vector<1x32x64xf32> to vector<32x64xf32>
    %cst_112 = arith.constant dense<0.000000e+00> : vector<16x64xf32>
    %224 = tpu.matmul %221, %223, %cst_112 {dimension_numbers = #tpu.dot_dimension_numbers<[1], [0], [0], [1], [0, 0, 1, 1], [], []>} : vector<16x32xf32>, vector<32x64xf32>, vector<16x64xf32> -> vector<16x64xf32>
    %c1_113 = arith.constant 1 : index
    %c0_114 = arith.constant 0 : index
    %c0_115 = arith.constant 0 : index
    %225 = vector.load %arg11[%c1_113, %c0_114, %c0_115] : memref<2x1x64xf32, #tpu.memory_space<vmem>>, vector<1x1x64xf32>
    %226 = vector.shape_cast %225 : vector<1x1x64xf32> to vector<1x64xf32>
    %227 = vector.broadcast %226 : vector<1x64xf32> to vector<16x64xf32>
    %228 = arith.addf %224, %227 : vector<16x64xf32>
    %cst_116 = arith.constant 0.000000e+00 : f32
    %229 = vector.broadcast %cst_116 : f32 to vector<16x64xf32>
    %230 = arith.maximumf %228, %229 : vector<16x64xf32>
    %c1_117 = arith.constant 1 : index
    %c0_118 = arith.constant 0 : index
    %c0_119 = arith.constant 0 : index
    %231 = vector.load %arg12[%c1_117, %c0_118, %c0_119] : memref<2x64x32xf32, #tpu.memory_space<vmem>>, vector<1x64x32xf32>
    %232 = vector.shape_cast %231 : vector<1x64x32xf32> to vector<64x32xf32>
    %cst_120 = arith.constant dense<0.000000e+00> : vector<16x32xf32>
    %233 = tpu.matmul %230, %232, %cst_120 {dimension_numbers = #tpu.dot_dimension_numbers<[1], [0], [0], [1], [0, 0, 1, 1], [], []>} : vector<16x64xf32>, vector<64x32xf32>, vector<16x32xf32> -> vector<16x32xf32>
    %c1_121 = arith.constant 1 : index
    %c0_122 = arith.constant 0 : index
    %c0_123 = arith.constant 0 : index
    %234 = vector.load %arg13[%c1_121, %c0_122, %c0_123] : memref<2x1x32xf32, #tpu.memory_space<vmem>>, vector<1x1x32xf32>
    %235 = vector.shape_cast %234 : vector<1x1x32xf32> to vector<1x32xf32>
    %236 = vector.broadcast %235 : vector<1x32xf32> to vector<16x32xf32>
    %237 = arith.addf %233, %236 : vector<16x32xf32>
    %238 = arith.addf %221, %237 : vector<16x32xf32>
    %c1_124 = arith.constant 1 : index
    %c0_125 = arith.constant 0 : index
    %c0_126 = arith.constant 0 : index
    %239 = vector.load %arg14[%c1_124, %c0_125, %c0_126] : memref<2x1x32xf32, #tpu.memory_space<vmem>>, vector<1x1x32xf32>
    %240 = vector.shape_cast %239 : vector<1x1x32xf32> to vector<1x32xf32>
    %c1_127 = arith.constant 1 : index
    %c0_128 = arith.constant 0 : index
    %c0_129 = arith.constant 0 : index
    %241 = vector.load %arg15[%c1_127, %c0_128, %c0_129] : memref<2x1x32xf32, #tpu.memory_space<vmem>>, vector<1x1x32xf32>
    %242 = vector.shape_cast %241 : vector<1x1x32xf32> to vector<1x32xf32>
    %cst_130 = arith.constant dense<0.000000e+00> : vector<16xf32>
    %243 = vector.multi_reduction <add>, %238, %cst_130 [1] : vector<16x32xf32> to vector<16xf32>
    %244 = vector.shape_cast %243 : vector<16xf32> to vector<16x1xf32>
    %cst_131 = arith.constant 3.200000e+01 : f32
    %245 = vector.broadcast %cst_131 : f32 to vector<16x1xf32>
    %246 = arith.divf %244, %245 : vector<16x1xf32>
    %247 = vector.broadcast %246 : vector<16x1xf32> to vector<16x32xf32>
    %248 = arith.subf %238, %247 : vector<16x32xf32>
    %249 = arith.mulf %248, %248 : vector<16x32xf32>
    %cst_132 = arith.constant dense<0.000000e+00> : vector<16xf32>
    %250 = vector.multi_reduction <add>, %249, %cst_132 [1] : vector<16x32xf32> to vector<16xf32>
    %251 = vector.shape_cast %250 : vector<16xf32> to vector<16x1xf32>
    %cst_133 = arith.constant 3.200000e+01 : f32
    %252 = vector.broadcast %cst_133 : f32 to vector<16x1xf32>
    %253 = arith.divf %251, %252 : vector<16x1xf32>
    %254 = vector.broadcast %246 : vector<16x1xf32> to vector<16x32xf32>
    %255 = arith.subf %238, %254 : vector<16x32xf32>
    %cst_134 = arith.constant 9.99999974E-6 : f32
    %256 = vector.broadcast %cst_134 : f32 to vector<16x1xf32>
    %257 = arith.addf %253, %256 : vector<16x1xf32>
    %258 = math.rsqrt %257 : vector<16x1xf32>
    %259 = vector.broadcast %258 : vector<16x1xf32> to vector<16x32xf32>
    %260 = arith.mulf %255, %259 : vector<16x32xf32>
    %261 = vector.broadcast %240 : vector<1x32xf32> to vector<16x32xf32>
    %262 = arith.mulf %260, %261 : vector<16x32xf32>
    %263 = vector.broadcast %242 : vector<1x32xf32> to vector<16x32xf32>
    %264 = arith.addf %262, %263 : vector<16x32xf32>
    %c0_135 = arith.constant 0 : index
    %c0_136 = arith.constant 0 : index
    %265 = vector.load %arg16[%c0_135, %c0_136] : memref<1x32xf32, #tpu.memory_space<vmem>>, vector<1x32xf32>
    %c0_137 = arith.constant 0 : index
    %c0_138 = arith.constant 0 : index
    %266 = vector.load %arg17[%c0_137, %c0_138] : memref<1x32xf32, #tpu.memory_space<vmem>>, vector<1x32xf32>
    %cst_139 = arith.constant dense<0.000000e+00> : vector<16xf32>
    %267 = vector.multi_reduction <add>, %264, %cst_139 [1] : vector<16x32xf32> to vector<16xf32>
    %268 = vector.shape_cast %267 : vector<16xf32> to vector<16x1xf32>
    %cst_140 = arith.constant 3.200000e+01 : f32
    %269 = vector.broadcast %cst_140 : f32 to vector<16x1xf32>
    %270 = arith.divf %268, %269 : vector<16x1xf32>
    %271 = vector.broadcast %270 : vector<16x1xf32> to vector<16x32xf32>
    %272 = arith.subf %264, %271 : vector<16x32xf32>
    %273 = arith.mulf %272, %272 : vector<16x32xf32>
    %cst_141 = arith.constant dense<0.000000e+00> : vector<16xf32>
    %274 = vector.multi_reduction <add>, %273, %cst_141 [1] : vector<16x32xf32> to vector<16xf32>
    %275 = vector.shape_cast %274 : vector<16xf32> to vector<16x1xf32>
    %cst_142 = arith.constant 3.200000e+01 : f32
    %276 = vector.broadcast %cst_142 : f32 to vector<16x1xf32>
    %277 = arith.divf %275, %276 : vector<16x1xf32>
    %278 = vector.broadcast %270 : vector<16x1xf32> to vector<16x32xf32>
    %279 = arith.subf %264, %278 : vector<16x32xf32>
    %cst_143 = arith.constant 9.99999974E-6 : f32
    %280 = vector.broadcast %cst_143 : f32 to vector<16x1xf32>
    %281 = arith.addf %277, %280 : vector<16x1xf32>
    %282 = math.rsqrt %281 : vector<16x1xf32>
    %283 = vector.broadcast %282 : vector<16x1xf32> to vector<16x32xf32>
    %284 = arith.mulf %279, %283 : vector<16x32xf32>
    %285 = vector.broadcast %265 : vector<1x32xf32> to vector<16x32xf32>
    %286 = arith.mulf %284, %285 : vector<16x32xf32>
    %287 = vector.broadcast %266 : vector<1x32xf32> to vector<16x32xf32>
    %288 = arith.addf %286, %287 : vector<16x32xf32>
    %c0_144 = arith.constant 0 : index
    %c0_145 = arith.constant 0 : index
    %289 = vector.load %arg3[%c0_144, %c0_145] : memref<2x16xf32, #tpu.memory_space<vmem>>, vector<2x16xf32>
    %cst_146 = arith.constant dense<0.000000e+00> : vector<2x32xf32>
    %290 = tpu.matmul %289, %288, %cst_146 {dimension_numbers = #tpu.dot_dimension_numbers<[1], [0], [0], [1], [0, 0, 1, 1], [], []>} : vector<2x16xf32>, vector<16x32xf32>, vector<2x32xf32> -> vector<2x32xf32>
    %cst_147 = arith.constant dense<0.000000e+00> : vector<2xf32>
    %291 = vector.multi_reduction <add>, %289, %cst_147 [1] : vector<2x16xf32> to vector<2xf32>
    %292 = vector.shape_cast %291 : vector<2xf32> to vector<2x1xf32>
    %cst_148 = arith.constant 1.000000e+00 : f32
    %293 = vector.broadcast %cst_148 : f32 to vector<2x1xf32>
    %294 = arith.maximumf %292, %293 : vector<2x1xf32>
    %295 = vector.broadcast %294 : vector<2x1xf32> to vector<2x32xf32>
    %296 = arith.divf %290, %295 : vector<2x32xf32>
    %c0_149 = arith.constant 0 : index
    %c0_150 = arith.constant 0 : index
    %297 = vector.load %arg19[%c0_149, %c0_150] : memref<2x32xf32, #tpu.memory_space<vmem>>, vector<2x32xf32>
    tpu.vector_store %arg19[%c0_149, %c0_150], %296 {strides = array<i32>} : memref<2x32xf32, #tpu.memory_space<vmem>>, vector<2x32xf32>,
    return
  }
}

</mosaic_0001>

<llo_original>
// kernel: tpu_custom_call.1
$region0: #{tpu_custom_call.1}
  #allocation0 [shape = 'u32[]', space=smem, size = 0x4, offset = 0x4, fixed_abs, tag = 'smem constant byte address 0x4 - core index']
  #allocation1 [shape = 'u32[72,128]{1,0:T(1,128)}', space=vmem, size = 0x9000, scoped, tag = 'internal scratch']
  %s0 = inlined_call_operand.vmem [shape: f32[16,32], index: 0, kind: input, shape index: {}]
  %s1 = inlined_call_operand.hbm [shape: f32[16,32], index: 1, kind: input, shape index: {}]
  %s2 = inlined_call_operand.vmem [shape: f32[16,1], index: 2, kind: input, shape index: {}]
  %s3 = inlined_call_operand.hbm [shape: f32[2,16], index: 3, kind: input, shape index: {}]
  %s4 = inlined_call_operand.vmem [shape: f32[2,32,96], index: 4, kind: input, shape index: {}]
  %s5 = inlined_call_operand.hbm [shape: f32[2,1,96], index: 5, kind: input, shape index: {}]
  %s6 = inlined_call_operand.vmem [shape: f32[2,32,32], index: 6, kind: input, shape index: {}]
  %s7 = inlined_call_operand.vmem [shape: f32[2,1,32], index: 7, kind: input, shape index: {}]
  %s8 = inlined_call_operand.vmem [shape: f32[2,1,32], index: 8, kind: input, shape index: {}]
  %s9 = inlined_call_operand.vmem [shape: f32[2,1,32], index: 9, kind: input, shape index: {}]
  %s10 = inlined_call_operand.vmem [shape: f32[2,32,64], index: 10, kind: input, shape index: {}]
  %s11 = inlined_call_operand.hbm [shape: f32[2,1,64], index: 11, kind: input, shape index: {}]
  %s12 = inlined_call_operand.vmem [shape: f32[2,64,32], index: 12, kind: input, shape index: {}]
  %s13 = inlined_call_operand.vmem [shape: f32[2,1,32], index: 13, kind: input, shape index: {}]
  %s14 = inlined_call_operand.vmem [shape: f32[2,1,32], index: 14, kind: input, shape index: {}]
  %s15 = inlined_call_operand.vmem [shape: f32[2,1,32], index: 15, kind: input, shape index: {}]
  %s16 = inlined_call_operand.vmem [shape: f32[1,32], index: 16, kind: input, shape index: {}]
  %s17 = inlined_call_operand.vmem [shape: f32[1,32], index: 17, kind: input, shape index: {}]
  %s18 = inlined_call_operand.hbm [shape: f32[32,32], index: 18, kind: input, shape index: {}]
  %s19 = inlined_call_operand.hbm [shape: f32[2,32], index: 19, kind: output, shape index: {}]
  %s20 = sld [smem:[#allocation0]]
  $region106: #{tpu_custom_call.1} parent=0
    _
  %s22 = ssub.s32 1, %s20
  %s23 = scalar_select 0, %s22, %s20
  $region1: #{tpu_custom_call.1} parent=0
    #allocation2 [shape = 'u8[8192]{0}', space=vmem, size = 0x2000, scoped, tag = 'input window, operand 1, single buffered']
    #allocation3 [shape = 's32[1]{0}', space=sflag, size = 0x4, scoped, tag = 'scoped memory for tpu_custom_call.1']
    #allocation4 [shape = 's32[1]{0}', space=sflag, size = 0x4, scoped, tag = 'scoped memory for tpu_custom_call.1']
    #allocation5 [shape = 'u8[1024]{0}', space=vmem, size = 0x400, scoped, tag = 'input window, operand 3, single buffered']
    #allocation6 [shape = 's32[1]{0}', space=sflag, size = 0x4, scoped, tag = 'scoped memory for tpu_custom_call.1']
    #allocation7 [shape = 'u8[1024]{0}', space=vmem, size = 0x400, scoped, tag = 'input window, operand 5, single buffered']
    #allocation8 [shape = 'u8[1024]{0}', space=vmem, size = 0x400, scoped, tag = 'input window, operand 11, single buffered']
    #allocation9 [shape = 's32[1]{0}', space=sflag, size = 0x4, scoped, tag = 'scoped memory for tpu_custom_call.1']
    #allocation10 [shape = 'u8[16384]{0}', space=vmem, size = 0x4000, scoped, tag = 'input window, operand 18, single buffered']
    #allocation11 [shape = 'u8[1024]{0}', space=vmem, size = 0x400, scoped, tag = 'output window, operand 0, single buffered']
    %24 = vsyncpa [#allocation3], 0
    %25 = vsyncpa [#allocation6], 0
    %26 = vsyncpa [#allocation9], 0
    %27 = vsyncpa [#allocation4], 0
    // Predicated region
    $region2: #{tpu_custom_call.1} parent=1 // pred_check
      _
    $region3: #{tpu_custom_call.1} parent=1 // pred_check_branch
      %29 = sbr.rel (0) target = $region5
    $region4: #{tpu_custom_call.1} parent=1 // pred_region
      _
    $region5: #{tpu_custom_call.1} parent=1 // pred_fallthru
      _
    // Predicated region
    $region6: #{tpu_custom_call.1} parent=1 // pred_check
      _
    $region7: #{tpu_custom_call.1} parent=1 // pred_check_branch
      %31 = sbr.rel (0) target = $region9
    $region8: #{tpu_custom_call.1} parent=1 // pred_region
      %33 = vsyncadd [#allocation3], 0
      %s34 = sshll.u32 %s1, 4
      %s35 = int_to_ptr.hbm [resolvable:$true] %s34
      %s36 = sshll.u32 [#allocation2], 4
      %s37 = int_to_ptr.vmem [resolvable:$true] %s36
      %42 = dma.hbm_to_vmem [thread:$0]  %s35, 256, %s37, [#allocation3], 128, 128, 8
    $region9: #{tpu_custom_call.1} parent=1 // pred_fallthru
      _
    // Predicated region
    $region10: #{tpu_custom_call.1} parent=1 // pred_check
      _
    $region11: #{tpu_custom_call.1} parent=1 // pred_check_branch
      %44 = sbr.rel (0) target = $region13
    $region12: #{tpu_custom_call.1} parent=1 // pred_region
      _
    $region13: #{tpu_custom_call.1} parent=1 // pred_fallthru
      _
    // Predicated region
    $region14: #{tpu_custom_call.1} parent=1 // pred_check
      _
    $region15: #{tpu_custom_call.1} parent=1 // pred_check_branch
      %46 = sbr.rel (0) target = $region17
    $region16: #{tpu_custom_call.1} parent=1 // pred_region
      %48 = vsyncadd [#allocation6], 0
      %s50 = sshll.u32 %s3, 4
      %s51 = int_to_ptr.hbm [resolvable:$true] %s50
      %s52 = sshll.u32 [#allocation5], 4
      %s53 = int_to_ptr.vmem [resolvable:$true] %s52
      %55 = dma.hbm_to_vmem [thread:$0]  %s51, 32, %s53, [#allocation6]
    $region17: #{tpu_custom_call.1} parent=1 // pred_fallthru
      _
    // Predicated region
    $region18: #{tpu_custom_call.1} parent=1 // pred_check
      _
    $region19: #{tpu_custom_call.1} parent=1 // pred_check_branch
      %57 = sbr.rel (0) target = $region21
    $region20: #{tpu_custom_call.1} parent=1 // pred_region
      _
    $region21: #{tpu_custom_call.1} parent=1 // pred_fallthru
      _
    // Predicated region
    $region22: #{tpu_custom_call.1} parent=1 // pred_check
      _
    $region23: #{tpu_custom_call.1} parent=1 // pred_check_branch
      %59 = sbr.rel (0) target = $region25
    $region24: #{tpu_custom_call.1} parent=1 // pred_region
      %61 = vsyncadd [#allocation6], 0
      %s62 = sshll.u32 %s5, 4
      %s63 = int_to_ptr.hbm [resolvable:$true] %s62
      %s64 = sshll.u32 [#allocation7], 4
      %s65 = int_to_ptr.vmem [resolvable:$true] %s64
      %70 = dma.hbm_to_vmem [thread:$0]  %s63, 32, %s65, [#allocation6], 16, 16, 1
    $region25: #{tpu_custom_call.1} parent=1 // pred_fallthru
      _
    // Predicated region
    $region26: #{tpu_custom_call.1} parent=1 // pred_check
      _
    $region27: #{tpu_custom_call.1} parent=1 // pred_check_branch
      %72 = sbr.rel (0) target = $region29
    $region28: #{tpu_custom_call.1} parent=1 // pred_region
      _
    $region29: #{tpu_custom_call.1} parent=1 // pred_fallthru
      _
    // Predicated region
    $region30: #{tpu_custom_call.1} parent=1 // pred_check
      _
    $region31: #{tpu_custom_call.1} parent=1 // pred_check_branch
      %74 = sbr.rel (0) target = $region33
    $region32: #{tpu_custom_call.1} parent=1 // pred_region
      _
    $region33: #{tpu_custom_call.1} parent=1 // pred_fallthru
      _
    // Predicated region
    $region34: #{tpu_custom_call.1} parent=1 // pred_check
      _
    $region35: #{tpu_custom_call.1} parent=1 // pred_check_branch
      %76 = sbr.rel (0) target = $region37
    $region36: #{tpu_custom_call.1} parent=1 // pred_region
      _
    $region37: #{tpu_custom_call.1} parent=1 // pred_fallthru
      _
    // Predicated region
    $region38: #{tpu_custom_call.1} parent=1 // pred_check
      _
    $region39: #{tpu_custom_call.1} parent=1 // pred_check_branch
      %78 = sbr.rel (0) target = $region41
    $region40: #{tpu_custom_call.1} parent=1 // pred_region
      _
    $region41: #{tpu_custom_call.1} parent=1 // pred_fallthru
      _
    // Predicated region
    $region42: #{tpu_custom_call.1} parent=1 // pred_check
      _
    $region43: #{tpu_custom_call.1} parent=1 // pred_check_branch
      %80 = sbr.rel (0) target = $region45
    $region44: #{tpu_custom_call.1} parent=1 // pred_region
      _
    $region45: #{tpu_custom_call.1} parent=1 // pred_fallthru
      _
    // Predicated region
    $region46: #{tpu_custom_call.1} parent=1 // pred_check
      _
    $region47: #{tpu_custom_call.1} parent=1 // pred_check_branch
      %82 = sbr.rel (0) target = $region49
    $region48: #{tpu_custom_call.1} parent=1 // pred_region
      %84 = vsyncadd [#allocation9], 0
      %s85 = sshll.u32 %s11, 4
      %s86 = int_to_ptr.hbm [resolvable:$true] %s85
      %s87 = sshll.u32 [#allocation8], 4
      %s88 = int_to_ptr.vmem [resolvable:$true] %s87
      %93 = dma.hbm_to_vmem [thread:$0]  %s86, 32, %s88, [#allocation9], 16, 16, 1
    $region49: #{tpu_custom_call.1} parent=1 // pred_fallthru
      _
    // Predicated region
    $region50: #{tpu_custom_call.1} parent=1 // pred_check
      _
    $region51: #{tpu_custom_call.1} parent=1 // pred_check_branch
      %95 = sbr.rel (0) target = $region53
    $region52: #{tpu_custom_call.1} parent=1 // pred_region
      _
    $region53: #{tpu_custom_call.1} parent=1 // pred_fallthru
      _
    // Predicated region
    $region54: #{tpu_custom_call.1} parent=1 // pred_check
      _
    $region55: #{tpu_custom_call.1} parent=1 // pred_check_branch
      %97 = sbr.rel (0) target = $region57
    $region56: #{tpu_custom_call.1} parent=1 // pred_region
      _
    $region57: #{tpu_custom_call.1} parent=1 // pred_fallthru
      _
    // Predicated region
    $region58: #{tpu_custom_call.1} parent=1 // pred_check
      _
    $region59: #{tpu_custom_call.1} parent=1 // pred_check_branch
      %99 = sbr.rel (0) target = $region61
    $region60: #{tpu_custom_call.1} parent=1 // pred_region
      _
    $region61: #{tpu_custom_call.1} parent=1 // pred_fallthru
      _
    // Predicated region
    $region62: #{tpu_custom_call.1} parent=1 // pred_check
      _
    $region63: #{tpu_custom_call.1} parent=1 // pred_check_branch
      %101 = sbr.rel (0) target = $region65
    $region64: #{tpu_custom_call.1} parent=1 // pred_region
      _
    $region65: #{tpu_custom_call.1} parent=1 // pred_fallthru
      _
    // Predicated region
    $region66: #{tpu_custom_call.1} parent=1 // pred_check
      _
    $region67: #{tpu_custom_call.1} parent=1 // pred_check_branch
      %103 = sbr.rel (0) target = $region69
    $region68: #{tpu_custom_call.1} parent=1 // pred_region
      _
    $region69: #{tpu_custom_call.1} parent=1 // pred_fallthru
      _
    // Predicated region
    $region70: #{tpu_custom_call.1} parent=1 // pred_check
      _
    $region71: #{tpu_custom_call.1} parent=1 // pred_check_branch
      %105 = sbr.rel (0) target = $region73
    $region72: #{tpu_custom_call.1} parent=1 // pred_region
      _
    $region73: #{tpu_custom_call.1} parent=1 // pred_fallthru
      _
    // Predicated region
    $region74: #{tpu_custom_call.1} parent=1 // pred_check
      _
    $region75: #{tpu_custom_call.1} parent=1 // pred_check_branch
      %107 = sbr.rel (0) target = $region77
    $region76: #{tpu_custom_call.1} parent=1 // pred_region
      %109 = vsyncadd [#allocation9], 0
      %s110 = sshll.u32 %s18, 4
      %s111 = int_to_ptr.hbm [resolvable:$true] %s110
      %s112 = sshll.u32 [#allocation10], 4
      %s113 = int_to_ptr.vmem [resolvable:$true] %s112
      %118 = dma.hbm_to_vmem [thread:$0]  %s111, 512, %s113, [#allocation9], 128, 128, 8
    $region77: #{tpu_custom_call.1} parent=1 // pred_fallthru
      _
    // Predicated region
    $region78: #{tpu_custom_call.1} parent=1 // pred_check
      _
    $region79: #{tpu_custom_call.1} parent=1 // pred_check_branch
      %120 = sbr.rel (0) target = $region81
    $region80: #{tpu_custom_call.1} parent=1 // pred_region
      %122 = dma.done [#allocation3], 256
    $region81: #{tpu_custom_call.1} parent=1 // pred_fallthru
      _
    // Predicated region
    $region82: #{tpu_custom_call.1} parent=1 // pred_check
      _
    $region83: #{tpu_custom_call.1} parent=1 // pred_check_branch
      %124 = sbr.rel (0) target = $region85
    $region84: #{tpu_custom_call.1} parent=1 // pred_region
      %126 = dma.done [#allocation6], 32
    $region85: #{tpu_custom_call.1} parent=1 // pred_fallthru
      _
    // Predicated region
    $region86: #{tpu_custom_call.1} parent=1 // pred_check
      _
    $region87: #{tpu_custom_call.1} parent=1 // pred_check_branch
      %128 = sbr.rel (0) target = $region89
    $region88: #{tpu_custom_call.1} parent=1 // pred_region
      %130 = dma.done [#allocation6], 32
    $region89: #{tpu_custom_call.1} parent=1 // pred_fallthru
      _
    // Predicated region
    $region90: #{tpu_custom_call.1} parent=1 // pred_check
      _
    $region91: #{tpu_custom_call.1} parent=1 // pred_check_branch
      %132 = sbr.rel (0) target = $region93
    $region92: #{tpu_custom_call.1} parent=1 // pred_region
      %134 = dma.done [#allocation9], 32
    $region93: #{tpu_custom_call.1} parent=1 // pred_fallthru
      _
    // Predicated region
    $region94: #{tpu_custom_call.1} parent=1 // pred_check
      _
    $region95: #{tpu_custom_call.1} parent=1 // pred_check_branch
      %136 = sbr.rel (0) target = $region97
    $region96: #{tpu_custom_call.1} parent=1 // pred_region
      %138 = dma.done [#allocation9], 512
    $region97: #{tpu_custom_call.1} parent=1 // pred_fallthru
      _
    %v139 = vld [vmem:[%s0] sm:$0xff]
    %v140 = vld [vmem:[%s0 + $0x8] sm:$0xff]
    %v141 = vld [vmem:[#allocation2] sm:$0xff]
    %v142 = vld [vmem:[#allocation2 + $0x8] sm:$0xff]
    %v143 = vadd.f32 %v139, %v141
    %v144 = vadd.f32 %v140, %v142
    %v145 = vld [vmem:[%s2] sm:$0xff]
    %v146 = vld [vmem:[%s2 + $0x8] sm:$0xff]
    %v147 = vld [vmem:[#allocation10] sm:$0xff]
    %v148 = vld [vmem:[#allocation10 + $0x8] sm:$0xff]
    %v149 = vld [vmem:[#allocation10 + $0x10] sm:$0xff]
    %v150 = vld [vmem:[#allocation10 + $0x18] sm:$0xff]
    %v151 = vld [vmem:[%s4] sm:$0xff]
    %v152 = vld [vmem:[%s4 + $0x8] sm:$0xff]
    %v153 = vld [vmem:[%s4 + $0x10] sm:$0xff]
    %v154 = vld [vmem:[%s4 + $0x18] sm:$0xff]
    %v155 = vld [vmem:[#allocation7] sm:$0x1]
    %v157 = vperm.slane %v155, 0
    %vm159 = vcmask 261120
    %v161 = vsel %vm159, %v143, 0
    %v164 = vsel %vm159, %v144, 0
    %166 = vmatpush.msra.mxu0 0.0
    %167 = vmatpush.msra.mxu0 0.0
    %168 = vmatpush.msra.mxu0 0.0
    %169 = vmatpush.msra.mxu0 0.0
    %170 = vmatpush.msra.mxu0 0.0
    %171 = vmatpush.msra.mxu0 0.0
    %172 = vmatpush.msra.mxu0 0.0
    %173 = vmatpush.msra.mxu0 0.0
    %174 = vmatpush.msra.mxu0 0.0
    %175 = vmatpush.msra.mxu0 0.0
    %176 = vmatpush.msra.mxu0 0.0
    %177 = vmatpush.msra.mxu0 0.0
    %178 = vmatpush.msra.mxu0 %v154
    %179 = vmatpush.msra.mxu0 %v153
    %180 = vmatpush.msra.mxu0 %v152
    %181 = vmatpush.msra.mxu0 %v151
    %182 = vmatmul.f32.gmra.mxu0 %v161
    %v183 = vpop.f32.mrf.mxu0
    %v184 = vadd.f32 %v157, %v183
    %185 = vmatmul.f32.gmra.mxu0 %v164
    %v186 = vpop.f32.mrf.mxu0
    %v187 = vadd.f32 %v157, %v186
    %188 = vdwg.mxu0
    %vm189 = vcmp.gt.f32.partialorder %v184, 0.0
    %vm190 = vcmp.gt.f32.partialorder %v187, 0.0
    %v191 = vadd.f32 %v184, 1.0
    %v192 = vadd.f32 %v187, 1.0
    %v193 = vmul.f32 %v184, 1.442695
    %v194 = vpow.pop %v193
    %v195 = vmul.f32 %v187, 1.442695
    %v196 = vpow.pop %v195
    %v197 = vsel %vm189, %v191, %v194
    %v198 = vsel %vm190, %v192, %v196
    %200 = vset.pattern.permute.xlu0 0
    %201 = vperm.xlu0 %200, %v145
    %v202 = vpop.permute.xlu0 %201
    %205 = vset.pattern.permute.xlu0 0
    %206 = vperm.xlu0 %205, %v146
    %v207 = vpop.permute.xlu0 %206
    %v209 = vmul.f32 %v197, %v202
    %v210 = vmul.f32 %v198, %v207
    %212 = vrot.lane.b32.xlu0 %v209, 96
    %v213 = vpop.permute.xlu0 %212
    %215 = vxpose.xlu0.b32.start [1/16] %v213, 128
    %216 = vxpose.xlu0.b32.cont [2/16] 0.0, 128
    %217 = vxpose.xlu0.b32.cont [3/16] 0.0, 128
    %218 = vxpose.xlu0.b32.cont [4/16] 0.0, 128
    %219 = vxpose.xlu0.b32.cont [5/16] 0.0, 128
    %220 = vxpose.xlu0.b32.cont [6/16] 0.0, 128
    %221 = vxpose.xlu0.b32.cont [7/16] 0.0, 128
    %222 = vxpose.xlu0.b32.cont [8/16] 0.0, 128
    %223 = vxpose.xlu0.b32.cont [9/16] 0.0, 128
    %224 = vxpose.xlu0.b32.cont [10/16] 0.0, 128
    %225 = vxpose.xlu0.b32.cont [11/16] 0.0, 128
    %226 = vxpose.xlu0.b32.cont [12/16] 0.0, 128
    %227 = vxpose.xlu0.b32.cont [13/16] 0.0, 128
    %228 = vxpose.xlu0.b32.cont [14/16] 0.0, 128
    %229 = vxpose.xlu0.b32.cont [15/16] 0.0, 128
    %230 = vxpose.xlu0.b32.end [16/16] 0.0, 128
    %v231 = vpop.trf.xlu0
    %v232 = vpop.trf.xlu0
    %v233 = vpop.trf.xlu0
    %v234 = vpop.trf.xlu0
    %v235 = vpop.trf.xlu0
    %v236 = vpop.trf.xlu0
    %v237 = vpop.trf.xlu0
    %v238 = vpop.trf.xlu0
    %v239 = vpop.trf.xlu0
    %v240 = vpop.trf.xlu0
    %v241 = vpop.trf.xlu0
    %v242 = vpop.trf.xlu0
    %v243 = vpop.trf.xlu0
    %v244 = vpop.trf.xlu0
    %v245 = vpop.trf.xlu0
    %v246 = vpop.trf.xlu0
    %248 = vrot.lane.b32.xlu0 %v184, 64
    %v249 = vpop.permute.xlu0 %248
    %vm251 = vcmask 64512
    %v253 = vsel %vm251, %v231, 0
    %v256 = vsel %vm251, %v232, 0
    %v259 = vsel %vm251, %v233, 0
    %v262 = vsel %vm251, %v234, 0
    %264 = vmatpush.msra.mxu0 0.0
    %265 = vmatpush.msra.mxu0 0.0
    %266 = vmatpush.msra.mxu0 0.0
    %267 = vmatpush.msra.mxu0 0.0
    %268 = vmatpush.msra.mxu0 0.0
    %269 = vmatpush.msra.mxu0 0.0
    %270 = vmatpush.msra.mxu0 0.0
    %271 = vmatpush.msra.mxu0 0.0
    %272 = vmatpush.msra.mxu0 0.0
    %273 = vmatpush.msra.mxu0 0.0
    %274 = vmatpush.msra.mxu0 0.0
    %275 = vmatpush.msra.mxu0 0.0
    %276 = vmatpush.msra.mxu0 0.0
    %277 = vmatpush.msra.mxu0 0.0
    %278 = vmatpush.msra.mxu0 0.0
    %279 = vmatpush.msra.mxu0 %v249
    %280 = vmatmul.f32.gmra.mxu0 %v253
    %v281 = vpop.f32.mrf.mxu0
    %v282 = vadd.f32 0.0, %v281
    %283 = vmatmul.f32.gmra.mxu0 %v256
    %v284 = vpop.f32.mrf.mxu0
    %v285 = vadd.f32 0.0, %v284
    %286 = vmatmul.f32.gmra.mxu0 %v259
    %v287 = vpop.f32.mrf.mxu0
    %v288 = vadd.f32 0.0, %v287
    %289 = vmatmul.f32.gmra.mxu0 %v262
    %v290 = vpop.f32.mrf.mxu0
    %v291 = vadd.f32 0.0, %v290
    %292 = vdwg.mxu0
    %v293 = vmul.f32 %v282, %v147
    %v294 = vmul.f32 %v285, %v148
    %v295 = vmul.f32 %v288, %v149
    %v296 = vmul.f32 %v291, %v150
    %v298 = vsel %vm159, %v197, 0
    %300 = vmatpush.msra.mxu0 0.0
    %301 = vmatpush.msra.mxu0 0.0
    %302 = vmatpush.msra.mxu0 0.0
    %303 = vmatpush.msra.mxu0 0.0
    %304 = vmatpush.msra.mxu0 0.0
    %305 = vmatpush.msra.mxu0 0.0
    %306 = vmatpush.msra.mxu0 0.0
    %307 = vmatpush.msra.mxu0 0.0
    %308 = vmatpush.msra.mxu0 0.0
    %309 = vmatpush.msra.mxu0 0.0
    %310 = vmatpush.msra.mxu0 0.0
    %311 = vmatpush.msra.mxu0 0.0
    %312 = vmatpush.msra.mxu0 %v296
    %313 = vmatpush.msra.mxu0 %v295
    %314 = vmatpush.msra.mxu0 %v294
    %315 = vmatpush.msra.mxu0 %v293
    %316 = vmatmul.f32.gmra.mxu0 %v298
    %v317 = vpop.f32.mrf.mxu0
    %v318 = vadd.f32 0.0, %v317
    %319 = vdwg.mxu0
    %vm320 = vcmask 523520
    %v321 = vsel %vm320, %v209, 0.0
    %v322 = vrot.slane %v321, 4
    %v323 = vadd.f32 %v321, %v322
    %v324 = vrot.slane %v323, 2
    %v325 = vadd.f32 %v323, %v324
    %v326 = vrot.slane %v325, 1
    %v327 = vadd.f32 %v325, %v326
    %329 = vrot.lane.b32.xlu0 %v327, 96
    %v330 = vpop.permute.xlu0 %329
    %v332 = vmul.f32 %v197, %v330
    %v334 = vsel %vm159, %v332, 0
    %336 = vmatpush.msra.mxu0 0.0
    %337 = vmatpush.msra.mxu0 0.0
    %338 = vmatpush.msra.mxu0 0.0
    %339 = vmatpush.msra.mxu0 0.0
    %340 = vmatpush.msra.mxu0 0.0
    %341 = vmatpush.msra.mxu0 0.0
    %342 = vmatpush.msra.mxu0 0.0
    %343 = vmatpush.msra.mxu0 0.0
    %344 = vmatpush.msra.mxu0 0.0
    %345 = vmatpush.msra.mxu0 0.0
    %346 = vmatpush.msra.mxu0 0.0
    %347 = vmatpush.msra.mxu0 0.0
    %348 = vmatpush.msra.mxu0 %v150
    %349 = vmatpush.msra.mxu0 %v149
    %350 = vmatpush.msra.mxu0 %v148
    %351 = vmatpush.msra.mxu0 %v147
    %352 = vmatmul.f32.gmra.mxu0 %v334
    %v353 = vpop.f32.mrf.mxu0
    %v354 = vadd.f32 1e-06, %v353
    %355 = vdwg.mxu0
    %v356 = vrcp.pop %v354
    %v357 = vmul.f32 %v354, %v356
    %v358 = vsub.f32 1.0, %v357
    %v359 = vmul.f32 %v356, %v358
    %v360 = vadd.f32 %v356, %v359
    %vm361 = vweird.f32 %v354
    %vm362 = vweird.f32 %v356
    %vm363 = vmor %vm361, %vm362
    %v364 = vsel %vm363, %v356, %v360
    %v365 = vand.u32 2147483647, %v354
    %vm366 = vcmp.eq.f32.partialorder %v365, 8.507059e+37
    %v367 = vand.u32 %v354, 2147483648
    %v368 = vor.u32 1.1754944e-38, %v367
    %v369 = vsel %vm366, %v368, %v364
    %v370 = vmul.f32 %v318, %v369
    %372 = vrot.lane.b32.xlu0 %v210, 96
    %v373 = vpop.permute.xlu0 %372
    %375 = vxpose.xlu0.b32.start [1/16] %v373, 128
    %376 = vxpose.xlu0.b32.cont [2/16] 0.0, 128
    %377 = vxpose.xlu0.b32.cont [3/16] 0.0, 128
    %378 = vxpose.xlu0.b32.cont [4/16] 0.0, 128
    %379 = vxpose.xlu0.b32.cont [5/16] 0.0, 128
    %380 = vxpose.xlu0.b32.cont [6/16] 0.0, 128
    %381 = vxpose.xlu0.b32.cont [7/16] 0.0, 128
    %382 = vxpose.xlu0.b32.cont [8/16] 0.0, 128
    %383 = vxpose.xlu0.b32.cont [9/16] 0.0, 128
    %384 = vxpose.xlu0.b32.cont [10/16] 0.0, 128
    %385 = vxpose.xlu0.b32.cont [11/16] 0.0, 128
    %386 = vxpose.xlu0.b32.cont [12/16] 0.0, 128
    %387 = vxpose.xlu0.b32.cont [13/16] 0.0, 128
    %388 = vxpose.xlu0.b32.cont [14/16] 0.0, 128
    %389 = vxpose.xlu0.b32.cont [15/16] 0.0, 128
    %390 = vxpose.xlu0.b32.end [16/16] 0.0, 128
    %v391 = vpop.trf.xlu0
    %v392 = vpop.trf.xlu0
    %v393 = vpop.trf.xlu0
    %v394 = vpop.trf.xlu0
    %v395 = vpop.trf.xlu0
    %v396 = vpop.trf.xlu0
    %v397 = vpop.trf.xlu0
    %v398 = vpop.trf.xlu0
    %v399 = vpop.trf.xlu0
    %v400 = vpop.trf.xlu0
    %v401 = vpop.trf.xlu0
    %v402 = vpop.trf.xlu0
    %v403 = vpop.trf.xlu0
    %v404 = vpop.trf.xlu0
    %v405 = vpop.trf.xlu0
    %v406 = vpop.trf.xlu0
    %408 = vrot.lane.b32.xlu0 %v187, 64
    %v409 = vpop.permute.xlu0 %408
    %v412 = vsel %vm251, %v391, 0
    %v415 = vsel %vm251, %v392, 0
    %v418 = vsel %vm251, %v393, 0
    %v421 = vsel %vm251, %v394, 0
    %423 = vmatpush.msra.mxu0 0.0
    %424 = vmatpush.msra.mxu0 0.0
    %425 = vmatpush.msra.mxu0 0.0
    %426 = vmatpush.msra.mxu0 0.0
    %427 = vmatpush.msra.mxu0 0.0
    %428 = vmatpush.msra.mxu0 0.0
    %429 = vmatpush.msra.mxu0 0.0
    %430 = vmatpush.msra.mxu0 0.0
    %431 = vmatpush.msra.mxu0 0.0
    %432 = vmatpush.msra.mxu0 0.0
    %433 = vmatpush.msra.mxu0 0.0
    %434 = vmatpush.msra.mxu0 0.0
    %435 = vmatpush.msra.mxu0 0.0
    %436 = vmatpush.msra.mxu0 0.0
    %437 = vmatpush.msra.mxu0 0.0
    %438 = vmatpush.msra.mxu0 %v409
    %439 = vmatmul.f32.gmra.mxu0 %v412
    %v440 = vpop.f32.mrf.mxu0
    %v441 = vadd.f32 0.0, %v440
    %442 = vmatmul.f32.gmra.mxu0 %v415
    %v443 = vpop.f32.mrf.mxu0
    %v444 = vadd.f32 0.0, %v443
    %445 = vmatmul.f32.gmra.mxu0 %v418
    %v446 = vpop.f32.mrf.mxu0
    %v447 = vadd.f32 0.0, %v446
    %448 = vmatmul.f32.gmra.mxu0 %v421
    %v449 = vpop.f32.mrf.mxu0
    %v450 = vadd.f32 0.0, %v449
    %451 = vdwg.mxu0
    %v452 = vmul.f32 %v441, %v147
    %v453 = vmul.f32 %v444, %v148
    %v454 = vmul.f32 %v447, %v149
    %v455 = vmul.f32 %v450, %v150
    %v457 = vsel %vm159, %v198, 0
    %459 = vmatpush.msra.mxu0 0.0
    %460 = vmatpush.msra.mxu0 0.0
    %461 = vmatpush.msra.mxu0 0.0
    %462 = vmatpush.msra.mxu0 0.0
    %463 = vmatpush.msra.mxu0 0.0
    %464 = vmatpush.msra.mxu0 0.0
    %465 = vmatpush.msra.mxu0 0.0
    %466 = vmatpush.msra.mxu0 0.0
    %467 = vmatpush.msra.mxu0 0.0
    %468 = vmatpush.msra.mxu0 0.0
    %469 = vmatpush.msra.mxu0 0.0
    %470 = vmatpush.msra.mxu0 0.0
    %471 = vmatpush.msra.mxu0 %v455
    %472 = vmatpush.msra.mxu0 %v454
    %473 = vmatpush.msra.mxu0 %v453
    %474 = vmatpush.msra.mxu0 %v452
    %475 = vmatmul.f32.gmra.mxu0 %v457
    %v476 = vpop.f32.mrf.mxu0
    %v477 = vadd.f32 0.0, %v476
    %478 = vdwg.mxu0
    %v479 = vsel %vm320, %v210, 0.0
    %v480 = vrot.slane %v479, 4
    %v481 = vadd.f32 %v479, %v480
    %v482 = vrot.slane %v481, 2
    %v483 = vadd.f32 %v481, %v482
    %v484 = vrot.slane %v483, 1
    %v485 = vadd.f32 %v483, %v484
    %487 = vrot.lane.b32.xlu0 %v485, 96
    %v488 = vpop.permute.xlu0 %487
    %v490 = vmul.f32 %v198, %v488
    %v492 = vsel %vm159, %v490, 0
    %494 = vmatpush.msra.mxu0 0.0
    %495 = vmatpush.msra.mxu0 0.0
    %496 = vmatpush.msra.mxu0 0.0
    %497 = vmatpush.msra.mxu0 0.0
    %498 = vmatpush.msra.mxu0 0.0
    %499 = vmatpush.msra.mxu0 0.0
    %500 = vmatpush.msra.mxu0 0.0
    %501 = vmatpush.msra.mxu0 0.0
    %502 = vmatpush.msra.mxu0 0.0
    %503 = vmatpush.msra.mxu0 0.0
    %504 = vmatpush.msra.mxu0 0.0
    %505 = vmatpush.msra.mxu0 0.0
    %506 = vmatpush.msra.mxu0 %v150
    %507 = vmatpush.msra.mxu0 %v149
    %508 = vmatpush.msra.mxu0 %v148
    %509 = vmatpush.msra.mxu0 %v147
    %510 = vmatmul.f32.gmra.mxu0 %v492
    %v511 = vpop.f32.mrf.mxu0
    %v512 = vadd.f32 1e-06, %v511
    %513 = vdwg.mxu0
    %v514 = vrcp.pop %v512
    %v515 = vmul.f32 %v512, %v514
    %v516 = vsub.f32 1.0, %v515
    %v517 = vmul.f32 %v514, %v516
    %v518 = vadd.f32 %v514, %v517
    %vm519 = vweird.f32 %v512
    %vm520 = vweird.f32 %v514
    %vm521 = vmor %vm519, %vm520
    %v522 = vsel %vm521, %v514, %v518
    %v523 = vand.u32 2147483647, %v512
    %vm524 = vcmp.eq.f32.partialorder %v523, 8.507059e+37
    %v525 = vand.u32 %v512, 2147483648
    %v526 = vor.u32 1.1754944e-38, %v525
    %v527 = vsel %vm524, %v526, %v522
    %v528 = vmul.f32 %v477, %v527
    %v529 = vld [vmem:[%s6] sm:$0xff]
    %v530 = vld [vmem:[%s6 + $0x8] sm:$0xff]
    %v531 = vld [vmem:[%s6 + $0x10] sm:$0xff]
    %v532 = vld [vmem:[%s6 + $0x18] sm:$0xff]
    %v533 = vld [vmem:[%s7] sm:$0x1]
    %v535 = vperm.slane %v533, 0
    %v538 = vsel %vm159, %v370, 0
    %v541 = vsel %vm159, %v528, 0
    %543 = vmatpush.msra.mxu0 0.0
    %544 = vmatpush.msra.mxu0 0.0
    %545 = vmatpush.msra.mxu0 0.0
    %546 = vmatpush.msra.mxu0 0.0
    %547 = vmatpush.msra.mxu0 0.0
    %548 = vmatpush.msra.mxu0 0.0
    %549 = vmatpush.msra.mxu0 0.0
    %550 = vmatpush.msra.mxu0 0.0
    %551 = vmatpush.msra.mxu0 0.0
    %552 = vmatpush.msra.mxu0 0.0
    %553 = vmatpush.msra.mxu0 0.0
    %554 = vmatpush.msra.mxu0 0.0
    %555 = vmatpush.msra.mxu0 %v532
    %556 = vmatpush.msra.mxu0 %v531
    %557 = vmatpush.msra.mxu0 %v530
    %558 = vmatpush.msra.mxu0 %v529
    %559 = vmatmul.f32.gmra.mxu0 %v538
    %v560 = vpop.f32.mrf.mxu0
    %v561 = vadd.f32 %v535, %v560
    %562 = vmatmul.f32.gmra.mxu0 %v541
    %v563 = vpop.f32.mrf.mxu0
    %v564 = vadd.f32 %v535, %v563
    %565 = vdwg.mxu0
    %v566 = vadd.f32 %v143, %v561
    %v567 = vadd.f32 %v144, %v564
    %v568 = vld [vmem:[%s8] sm:$0x1]
    %v569 = vld [vmem:[%s9] sm:$0x1]
    %v570 = vsel %vm159, %v566, 0.0
    %571 = vadd.xlane.f32.xlu0 %v570
    %v572 = vpop.xlane.xlu0 %571
    %v573 = vsel %vm159, %v567, 0.0
    %574 = vadd.xlane.f32.xlu0 %v573
    %v575 = vpop.xlane.xlu0 %574
    %v576 = vrcp.pop 32.0
    %v577 = vmul.f32 32.0, %v576
    %v578 = vsub.f32 1.0, %v577
    %v579 = vmul.f32 %v576, %v578
    %v580 = vadd.f32 %v576, %v579
    %vm581 = vweird.f32 %v576
    %v582 = vsel %vm581, %v576, %v580
    %v583 = vmul.f32 %v572, %v582
    %v584 = vmul.f32 %v575, %v582
    %v585 = vsub.f32 %v566, %v583
    %v586 = vsub.f32 %v567, %v584
    %v587 = vmul.f32 %v585, %v585
    %v588 = vmul.f32 %v586, %v586
    %v589 = vsel %vm159, %v587, 0.0
    %590 = vadd.xlane.f32.xlu0 %v589
    %v591 = vpop.xlane.xlu0 %590
    %v592 = vsel %vm159, %v588, 0.0
    %593 = vadd.xlane.f32.xlu0 %v592
    %v594 = vpop.xlane.xlu0 %593
    %v595 = vmul.f32 %v591, %v582
    %v596 = vmul.f32 %v594, %v582
    %v597 = vadd.f32 %v595, 1e-05
    %v598 = vadd.f32 %v596, 1e-05
    %v599 = vrsqrt.pop %v597
    %v600 = vmul.f32 %v599, %v597
    %v601 = vmul.f32 %v600, %v599
    %v602 = vmul.f32 0.5, %v601
    %v603 = vsub.f32 1.5, %v602
    %v604 = vmul.f32 %v599, %v603
    %vm605 = vweird.f32 %v597
    %vm606 = vweird.f32 %v599
    %vm607 = vmor %vm605, %vm606
    %v608 = vsel %vm607, %v599, %v604
    %v609 = vrsqrt.pop %v598
    %v610 = vmul.f32 %v609, %v598
    %v611 = vmul.f32 %v610, %v609
    %v612 = vmul.f32 0.5, %v611
    %v613 = vsub.f32 1.5, %v612
    %v614 = vmul.f32 %v609, %v613
    %vm615 = vweird.f32 %v598
    %vm616 = vweird.f32 %v609
    %vm617 = vmor %vm615, %vm616
    %v618 = vsel %vm617, %v609, %v614
    %v619 = vmul.f32 %v585, %v608
    %v620 = vmul.f32 %v586, %v618
    %v622 = vperm.slane %v568, 0
    %v624 = vmul.f32 %v619, %v622
    %v625 = vmul.f32 %v620, %v622
    %v627 = vperm.slane %v569, 0
    %v629 = vadd.f32 %v624, %v627
    %v630 = vadd.f32 %v625, %v627
    %v631 = vld [vmem:[%s10] sm:$0xff]
    %v632 = vld [vmem:[%s10 + $0x8] sm:$0xff]
    %v633 = vld [vmem:[%s10 + $0x10] sm:$0xff]
    %v634 = vld [vmem:[%s10 + $0x18] sm:$0xff]
    %v635 = vld [vmem:[#allocation8] sm:$0x1]
    %v637 = vperm.slane %v635, 0
    %v640 = vsel %vm159, %v629, 0
    %v643 = vsel %vm159, %v630, 0
    %645 = vmatpush.msra.mxu0 0.0
    %646 = vmatpush.msra.mxu0 0.0
    %647 = vmatpush.msra.mxu0 0.0
    %648 = vmatpush.msra.mxu0 0.0
    %649 = vmatpush.msra.mxu0 0.0
    %650 = vmatpush.msra.mxu0 0.0
    %651 = vmatpush.msra.mxu0 0.0
    %652 = vmatpush.msra.mxu0 0.0
    %653 = vmatpush.msra.mxu0 0.0
    %654 = vmatpush.msra.mxu0 0.0
    %655 = vmatpush.msra.mxu0 0.0
    %656 = vmatpush.msra.mxu0 0.0
    %657 = vmatpush.msra.mxu0 %v634
    %658 = vmatpush.msra.mxu0 %v633
    %659 = vmatpush.msra.mxu0 %v632
    %660 = vmatpush.msra.mxu0 %v631
    %661 = vmatmul.f32.gmra.mxu0 %v640
    %v662 = vpop.f32.mrf.mxu0
    %v663 = vadd.f32 %v637, %v662
    %664 = vmatmul.f32.gmra.mxu0 %v643
    %v665 = vpop.f32.mrf.mxu0
    %v666 = vadd.f32 %v637, %v665
    %667 = vdwg.mxu0
    %v668 = vmax.f32 %v663, 0.0
    %v669 = vmax.f32 %v666, 0.0
    %v670 = vld [vmem:[%s12] sm:$0xff]
    %v671 = vld [vmem:[%s12 + $0x8] sm:$0xff]
    %v672 = vld [vmem:[%s12 + $0x10] sm:$0xff]
    %v673 = vld [vmem:[%s12 + $0x18] sm:$0xff]
    %v674 = vld [vmem:[%s12 + $0x20] sm:$0xff]
    %v675 = vld [vmem:[%s12 + $0x28] sm:$0xff]
    %v676 = vld [vmem:[%s12 + $0x30] sm:$0xff]
    %v677 = vld [vmem:[%s12 + $0x38] sm:$0xff]
    %v678 = vld [vmem:[%s13] sm:$0x1]
    %v680 = vperm.slane %v678, 0
    %vm682 = vcmask 523264
    %v684 = vsel %vm682, %v668, 0
    %v687 = vsel %vm682, %v669, 0
    %689 = vmatpush.msra.mxu0 0.0
    %690 = vmatpush.msra.mxu0 0.0
    %691 = vmatpush.msra.mxu0 0.0
    %692 = vmatpush.msra.mxu0 0.0
    %693 = vmatpush.msra.mxu0 0.0
    %694 = vmatpush.msra.mxu0 0.0
    %695 = vmatpush.msra.mxu0 0.0
    %696 = vmatpush.msra.mxu0 0.0
    %697 = vmatpush.msra.mxu0 %v677
    %698 = vmatpush.msra.mxu0 %v676
    %699 = vmatpush.msra.mxu0 %v675
    %700 = vmatpush.msra.mxu0 %v674
    %701 = vmatpush.msra.mxu0 %v673
    %702 = vmatpush.msra.mxu0 %v672
    %703 = vmatpush.msra.mxu0 %v671
    %704 = vmatpush.msra.mxu0 %v670
    %705 = vmatmul.f32.gmra.mxu0 %v684
    %v706 = vpop.f32.mrf.mxu0
    %v707 = vadd.f32 %v680, %v706
    %708 = vmatmul.f32.gmra.mxu0 %v687
    %v709 = vpop.f32.mrf.mxu0
    %v710 = vadd.f32 %v680, %v709
    %711 = vdwg.mxu0
    %v712 = vadd.f32 %v629, %v707
    %v713 = vadd.f32 %v630, %v710
    %v714 = vld [vmem:[%s14] sm:$0x1]
    %v715 = vld [vmem:[%s15] sm:$0x1]
    %v716 = vsel %vm159, %v712, 0.0
    %717 = vadd.xlane.f32.xlu0 %v716
    %v718 = vpop.xlane.xlu0 %717
    %v719 = vsel %vm159, %v713, 0.0
    %720 = vadd.xlane.f32.xlu0 %v719
    %v721 = vpop.xlane.xlu0 %720
    %v722 = vmul.f32 %v718, %v582
    %v723 = vmul.f32 %v721, %v582
    %v724 = vsub.f32 %v712, %v722
    %v725 = vsub.f32 %v713, %v723
    %v726 = vmul.f32 %v724, %v724
    %v727 = vmul.f32 %v725, %v725
    %v728 = vsel %vm159, %v726, 0.0
    %729 = vadd.xlane.f32.xlu0 %v728
    %v730 = vpop.xlane.xlu0 %729
    %v731 = vsel %vm159, %v727, 0.0
    %732 = vadd.xlane.f32.xlu0 %v731
    %v733 = vpop.xlane.xlu0 %732
    %v734 = vmul.f32 %v730, %v582
    %v735 = vmul.f32 %v733, %v582
    %v736 = vadd.f32 %v734, 1e-05
    %v737 = vadd.f32 %v735, 1e-05
    %v738 = vrsqrt.pop %v736
    %v739 = vmul.f32 %v738, %v736
    %v740 = vmul.f32 %v739, %v738
    %v741 = vmul.f32 0.5, %v740
    %v742 = vsub.f32 1.5, %v741
    %v743 = vmul.f32 %v738, %v742
    %vm744 = vweird.f32 %v736
    %vm745 = vweird.f32 %v738
    %vm746 = vmor %vm744, %vm745
    %v747 = vsel %vm746, %v738, %v743
    %v748 = vrsqrt.pop %v737
    %v749 = vmul.f32 %v748, %v737
    %v750 = vmul.f32 %v749, %v748
    %v751 = vmul.f32 0.5, %v750
    %v752 = vsub.f32 1.5, %v751
    %v753 = vmul.f32 %v748, %v752
    %vm754 = vweird.f32 %v737
    %vm755 = vweird.f32 %v748
    %vm756 = vmor %vm754, %vm755
    %v757 = vsel %vm756, %v748, %v753
    %v758 = vmul.f32 %v724, %v747
    %v759 = vmul.f32 %v725, %v757
    %v761 = vperm.slane %v714, 0
    %v763 = vmul.f32 %v758, %v761
    %v764 = vmul.f32 %v759, %v761
    %v766 = vperm.slane %v715, 0
    %v768 = vadd.f32 %v763, %v766
    %v769 = vadd.f32 %v764, %v766
    %s770 = scalar_lea.vmem %s4, 32
    %v771 = vld [vmem:[%s770] sm:$0xff]
    %v772 = vld [vmem:[%s770 + $0x8] sm:$0xff]
    %v773 = vld [vmem:[%s770 + $0x10] sm:$0xff]
    %v774 = vld [vmem:[%s770 + $0x18] sm:$0xff]
    %s775 = scalar_lea.vmem [#allocation7], 1
    %v776 = vld [vmem:[%s775] sm:$0x1]
    %v778 = vperm.slane %v776, 0
    %v781 = vsel %vm159, %v768, 0
    %v784 = vsel %vm159, %v769, 0
    %786 = vmatpush.msra.mxu0 0.0
    %787 = vmatpush.msra.mxu0 0.0
    %788 = vmatpush.msra.mxu0 0.0
    %789 = vmatpush.msra.mxu0 0.0
    %790 = vmatpush.msra.mxu0 0.0
    %791 = vmatpush.msra.mxu0 0.0
    %792 = vmatpush.msra.mxu0 0.0
    %793 = vmatpush.msra.mxu0 0.0
    %794 = vmatpush.msra.mxu0 0.0
    %795 = vmatpush.msra.mxu0 0.0
    %796 = vmatpush.msra.mxu0 0.0
    %797 = vmatpush.msra.mxu0 0.0
    %798 = vmatpush.msra.mxu0 %v774
    %799 = vmatpush.msra.mxu0 %v773
    %800 = vmatpush.msra.mxu0 %v772
    %801 = vmatpush.msra.mxu0 %v771
    %802 = vmatmul.f32.gmra.mxu0 %v781
    %v803 = vpop.f32.mrf.mxu0
    %v804 = vadd.f32 %v778, %v803
    %805 = vmatmul.f32.gmra.mxu0 %v784
    %v806 = vpop.f32.mrf.mxu0
    %v807 = vadd.f32 %v778, %v806
    %808 = vdwg.mxu0
    %vm809 = vcmp.gt.f32.partialorder %v804, 0.0
    %vm810 = vcmp.gt.f32.partialorder %v807, 0.0
    %v811 = vadd.f32 %v804, 1.0
    %v812 = vadd.f32 %v807, 1.0
    %v813 = vmul.f32 %v804, 1.442695
    %v814 = vpow.pop %v813
    %v815 = vmul.f32 %v807, 1.442695
    %v816 = vpow.pop %v815
    %v817 = vsel %vm809, %v811, %v814
    %v818 = vsel %vm810, %v812, %v816
    %v819 = vmul.f32 %v817, %v202
    %v820 = vmul.f32 %v818, %v207
    %822 = vrot.lane.b32.xlu0 %v819, 96
    %v823 = vpop.permute.xlu0 %822
    %825 = vxpose.xlu0.b32.start [1/16] %v823, 128
    %826 = vxpose.xlu0.b32.cont [2/16] 0.0, 128
    %827 = vxpose.xlu0.b32.cont [3/16] 0.0, 128
    %828 = vxpose.xlu0.b32.cont [4/16] 0.0, 128
    %829 = vxpose.xlu0.b32.cont [5/16] 0.0, 128
    %830 = vxpose.xlu0.b32.cont [6/16] 0.0, 128
    %831 = vxpose.xlu0.b32.cont [7/16] 0.0, 128
    %832 = vxpose.xlu0.b32.cont [8/16] 0.0, 128
    %833 = vxpose.xlu0.b32.cont [9/16] 0.0, 128
    %834 = vxpose.xlu0.b32.cont [10/16] 0.0, 128
    %835 = vxpose.xlu0.b32.cont [11/16] 0.0, 128
    %836 = vxpose.xlu0.b32.cont [12/16] 0.0, 128
    %837 = vxpose.xlu0.b32.cont [13/16] 0.0, 128
    %838 = vxpose.xlu0.b32.cont [14/16] 0.0, 128
    %839 = vxpose.xlu0.b32.cont [15/16] 0.0, 128
    %840 = vxpose.xlu0.b32.end [16/16] 0.0, 128
    %v841 = vpop.trf.xlu0
    %v842 = vpop.trf.xlu0
    %v843 = vpop.trf.xlu0
    %v844 = vpop.trf.xlu0
    %v845 = vpop.trf.xlu0
    %v846 = vpop.trf.xlu0
    %v847 = vpop.trf.xlu0
    %v848 = vpop.trf.xlu0
    %v849 = vpop.trf.xlu0
    %v850 = vpop.trf.xlu0
    %v851 = vpop.trf.xlu0
    %v852 = vpop.trf.xlu0
    %v853 = vpop.trf.xlu0
    %v854 = vpop.trf.xlu0
    %v855 = vpop.trf.xlu0
    %v856 = vpop.trf.xlu0
    %858 = vrot.lane.b32.xlu0 %v804, 64
    %v859 = vpop.permute.xlu0 %858
    %v862 = vsel %vm251, %v841, 0
    %v865 = vsel %vm251, %v842, 0
    %v868 = vsel %vm251, %v843, 0
    %v871 = vsel %vm251, %v844, 0
    %873 = vmatpush.msra.mxu0 0.0
    %874 = vmatpush.msra.mxu0 0.0
    %875 = vmatpush.msra.mxu0 0.0
    %876 = vmatpush.msra.mxu0 0.0
    %877 = vmatpush.msra.mxu0 0.0
    %878 = vmatpush.msra.mxu0 0.0
    %879 = vmatpush.msra.mxu0 0.0
    %880 = vmatpush.msra.mxu0 0.0
    %881 = vmatpush.msra.mxu0 0.0
    %882 = vmatpush.msra.mxu0 0.0
    %883 = vmatpush.msra.mxu0 0.0
    %884 = vmatpush.msra.mxu0 0.0
    %885 = vmatpush.msra.mxu0 0.0
    %886 = vmatpush.msra.mxu0 0.0
    %887 = vmatpush.msra.mxu0 0.0
    %888 = vmatpush.msra.mxu0 %v859
    %889 = vmatmul.f32.gmra.mxu0 %v862
    %v890 = vpop.f32.mrf.mxu0
    %v891 = vadd.f32 0.0, %v890
    %892 = vmatmul.f32.gmra.mxu0 %v865
    %v893 = vpop.f32.mrf.mxu0
    %v894 = vadd.f32 0.0, %v893
    %895 = vmatmul.f32.gmra.mxu0 %v868
    %v896 = vpop.f32.mrf.mxu0
    %v897 = vadd.f32 0.0, %v896
    %898 = vmatmul.f32.gmra.mxu0 %v871
    %v899 = vpop.f32.mrf.mxu0
    %v900 = vadd.f32 0.0, %v899
    %901 = vdwg.mxu0
    %v902 = vmul.f32 %v891, %v147
    %v903 = vmul.f32 %v894, %v148
    %v904 = vmul.f32 %v897, %v149
    %v905 = vmul.f32 %v900, %v150
    %v907 = vsel %vm159, %v817, 0
    %909 = vmatpush.msra.mxu0 0.0
    %910 = vmatpush.msra.mxu0 0.0
    %911 = vmatpush.msra.mxu0 0.0
    %912 = vmatpush.msra.mxu0 0.0
    %913 = vmatpush.msra.mxu0 0.0
    %914 = vmatpush.msra.mxu0 0.0
    %915 = vmatpush.msra.mxu0 0.0
    %916 = vmatpush.msra.mxu0 0.0
    %917 = vmatpush.msra.mxu0 0.0
    %918 = vmatpush.msra.mxu0 0.0
    %919 = vmatpush.msra.mxu0 0.0
    %920 = vmatpush.msra.mxu0 0.0
    %921 = vmatpush.msra.mxu0 %v905
    %922 = vmatpush.msra.mxu0 %v904
    %923 = vmatpush.msra.mxu0 %v903
    %924 = vmatpush.msra.mxu0 %v902
    %925 = vmatmul.f32.gmra.mxu0 %v907
    %v926 = vpop.f32.mrf.mxu0
    %v927 = vadd.f32 0.0, %v926
    %928 = vdwg.mxu0
    %v929 = vsel %vm320, %v819, 0.0
    %v930 = vrot.slane %v929, 4
    %v931 = vadd.f32 %v929, %v930
    %v932 = vrot.slane %v931, 2
    %v933 = vadd.f32 %v931, %v932
    %v934 = vrot.slane %v933, 1
    %v935 = vadd.f32 %v933, %v934
    %937 = vrot.lane.b32.xlu0 %v935, 96
    %v938 = vpop.permute.xlu0 %937
    %v940 = vmul.f32 %v817, %v938
    %v942 = vsel %vm159, %v940, 0
    %944 = vmatpush.msra.mxu0 0.0
    %945 = vmatpush.msra.mxu0 0.0
    %946 = vmatpush.msra.mxu0 0.0
    %947 = vmatpush.msra.mxu0 0.0
    %948 = vmatpush.msra.mxu0 0.0
    %949 = vmatpush.msra.mxu0 0.0
    %950 = vmatpush.msra.mxu0 0.0
    %951 = vmatpush.msra.mxu0 0.0
    %952 = vmatpush.msra.mxu0 0.0
    %953 = vmatpush.msra.mxu0 0.0
    %954 = vmatpush.msra.mxu0 0.0
    %955 = vmatpush.msra.mxu0 0.0
    %956 = vmatpush.msra.mxu0 %v150
    %957 = vmatpush.msra.mxu0 %v149
    %958 = vmatpush.msra.mxu0 %v148
    %959 = vmatpush.msra.mxu0 %v147
    %960 = vmatmul.f32.gmra.mxu0 %v942
    %v961 = vpop.f32.mrf.mxu0
    %v962 = vadd.f32 1e-06, %v961
    %963 = vdwg.mxu0
    %v964 = vrcp.pop %v962
    %v965 = vmul.f32 %v962, %v964
    %v966 = vsub.f32 1.0, %v965
    %v967 = vmul.f32 %v964, %v966
    %v968 = vadd.f32 %v964, %v967
    %vm969 = vweird.f32 %v962
    %vm970 = vweird.f32 %v964
    %vm971 = vmor %vm969, %vm970
    %v972 = vsel %vm971, %v964, %v968
    %v973 = vand.u32 2147483647, %v962
    %vm974 = vcmp.eq.f32.partialorder %v973, 8.507059e+37
    %v975 = vand.u32 %v962, 2147483648
    %v976 = vor.u32 1.1754944e-38, %v975
    %v977 = vsel %vm974, %v976, %v972
    %v978 = vmul.f32 %v927, %v977
    %980 = vrot.lane.b32.xlu0 %v820, 96
    %v981 = vpop.permute.xlu0 %980
    %983 = vxpose.xlu0.b32.start [1/16] %v981, 128
    %984 = vxpose.xlu0.b32.cont [2/16] 0.0, 128
    %985 = vxpose.xlu0.b32.cont [3/16] 0.0, 128
    %986 = vxpose.xlu0.b32.cont [4/16] 0.0, 128
    %987 = vxpose.xlu0.b32.cont [5/16] 0.0, 128
    %988 = vxpose.xlu0.b32.cont [6/16] 0.0, 128
    %989 = vxpose.xlu0.b32.cont [7/16] 0.0, 128
    %990 = vxpose.xlu0.b32.cont [8/16] 0.0, 128
    %991 = vxpose.xlu0.b32.cont [9/16] 0.0, 128
    %992 = vxpose.xlu0.b32.cont [10/16] 0.0, 128
    %993 = vxpose.xlu0.b32.cont [11/16] 0.0, 128
    %994 = vxpose.xlu0.b32.cont [12/16] 0.0, 128
    %995 = vxpose.xlu0.b32.cont [13/16] 0.0, 128
    %996 = vxpose.xlu0.b32.cont [14/16] 0.0, 128
    %997 = vxpose.xlu0.b32.cont [15/16] 0.0, 128
    %998 = vxpose.xlu0.b32.end [16/16] 0.0, 128
    %v999 = vpop.trf.xlu0
    %v1000 = vpop.trf.xlu0
    %v1001 = vpop.trf.xlu0
    %v1002 = vpop.trf.xlu0
    %v1003 = vpop.trf.xlu0
    %v1004 = vpop.trf.xlu0
    %v1005 = vpop.trf.xlu0
    %v1006 = vpop.trf.xlu0
    %v1007 = vpop.trf.xlu0
    %v1008 = vpop.trf.xlu0
    %v1009 = vpop.trf.xlu0
    %v1010 = vpop.trf.xlu0
    %v1011 = vpop.trf.xlu0
    %v1012 = vpop.trf.xlu0
    %v1013 = vpop.trf.xlu0
    %v1014 = vpop.trf.xlu0
    %1016 = vrot.lane.b32.xlu0 %v807, 64
    %v1017 = vpop.permute.xlu0 %1016
    %v1020 = vsel %vm251, %v999, 0
    %v1023 = vsel %vm251, %v1000, 0
    %v1026 = vsel %vm251, %v1001, 0
    %v1029 = vsel %vm251, %v1002, 0
    %1031 = vmatpush.msra.mxu0 0.0
    %1032 = vmatpush.msra.mxu0 0.0
    %1033 = vmatpush.msra.mxu0 0.0
    %1034 = vmatpush.msra.mxu0 0.0
    %1035 = vmatpush.msra.mxu0 0.0
    %1036 = vmatpush.msra.mxu0 0.0
    %1037 = vmatpush.msra.mxu0 0.0
    %1038 = vmatpush.msra.mxu0 0.0
    %1039 = vmatpush.msra.mxu0 0.0
    %1040 = vmatpush.msra.mxu0 0.0
    %1041 = vmatpush.msra.mxu0 0.0
    %1042 = vmatpush.msra.mxu0 0.0
    %1043 = vmatpush.msra.mxu0 0.0
    %1044 = vmatpush.msra.mxu0 0.0
    %1045 = vmatpush.msra.mxu0 0.0
    %1046 = vmatpush.msra.mxu0 %v1017
    %1047 = vmatmul.f32.gmra.mxu0 %v1020
    %v1048 = vpop.f32.mrf.mxu0
    %v1049 = vadd.f32 0.0, %v1048
    %1050 = vmatmul.f32.gmra.mxu0 %v1023
    %v1051 = vpop.f32.mrf.mxu0
    %v1052 = vadd.f32 0.0, %v1051
    %1053 = vmatmul.f32.gmra.mxu0 %v1026
    %v1054 = vpop.f32.mrf.mxu0
    %v1055 = vadd.f32 0.0, %v1054
    %1056 = vmatmul.f32.gmra.mxu0 %v1029
    %v1057 = vpop.f32.mrf.mxu0
    %v1058 = vadd.f32 0.0, %v1057
    %1059 = vdwg.mxu0
    %v1060 = vmul.f32 %v1049, %v147
    %v1061 = vmul.f32 %v1052, %v148
    %v1062 = vmul.f32 %v1055, %v149
    %v1063 = vmul.f32 %v1058, %v150
    %v1065 = vsel %vm159, %v818, 0
    %1067 = vmatpush.msra.mxu0 0.0
    %1068 = vmatpush.msra.mxu0 0.0
    %1069 = vmatpush.msra.mxu0 0.0
    %1070 = vmatpush.msra.mxu0 0.0
    %1071 = vmatpush.msra.mxu0 0.0
    %1072 = vmatpush.msra.mxu0 0.0
    %1073 = vmatpush.msra.mxu0 0.0
    %1074 = vmatpush.msra.mxu0 0.0
    %1075 = vmatpush.msra.mxu0 0.0
    %1076 = vmatpush.msra.mxu0 0.0
    %1077 = vmatpush.msra.mxu0 0.0
    %1078 = vmatpush.msra.mxu0 0.0
    %1079 = vmatpush.msra.mxu0 %v1063
    %1080 = vmatpush.msra.mxu0 %v1062
    %1081 = vmatpush.msra.mxu0 %v1061
    %1082 = vmatpush.msra.mxu0 %v1060
    %1083 = vmatmul.f32.gmra.mxu0 %v1065
    %v1084 = vpop.f32.mrf.mxu0
    %v1085 = vadd.f32 0.0, %v1084
    %1086 = vdwg.mxu0
    %v1087 = vsel %vm320, %v820, 0.0
    %v1088 = vrot.slane %v1087, 4
    %v1089 = vadd.f32 %v1087, %v1088
    %v1090 = vrot.slane %v1089, 2
    %v1091 = vadd.f32 %v1089, %v1090
    %v1092 = vrot.slane %v1091, 1
    %v1093 = vadd.f32 %v1091, %v1092
    %1095 = vrot.lane.b32.xlu0 %v1093, 96
    %v1096 = vpop.permute.xlu0 %1095
    %v1098 = vmul.f32 %v818, %v1096
    %v1100 = vsel %vm159, %v1098, 0
    %1102 = vmatpush.msra.mxu0 0.0
    %1103 = vmatpush.msra.mxu0 0.0
    %1104 = vmatpush.msra.mxu0 0.0
    %1105 = vmatpush.msra.mxu0 0.0
    %1106 = vmatpush.msra.mxu0 0.0
    %1107 = vmatpush.msra.mxu0 0.0
    %1108 = vmatpush.msra.mxu0 0.0
    %1109 = vmatpush.msra.mxu0 0.0
    %1110 = vmatpush.msra.mxu0 0.0
    %1111 = vmatpush.msra.mxu0 0.0
    %1112 = vmatpush.msra.mxu0 0.0
    %1113 = vmatpush.msra.mxu0 0.0
    %1114 = vmatpush.msra.mxu0 %v150
    %1115 = vmatpush.msra.mxu0 %v149
    %1116 = vmatpush.msra.mxu0 %v148
    %1117 = vmatpush.msra.mxu0 %v147
    %1118 = vmatmul.f32.gmra.mxu0 %v1100
    %v1119 = vpop.f32.mrf.mxu0
    %v1120 = vadd.f32 1e-06, %v1119
    %1121 = vdwg.mxu0
    %v1122 = vrcp.pop %v1120
    %v1123 = vmul.f32 %v1120, %v1122
    %v1124 = vsub.f32 1.0, %v1123
    %v1125 = vmul.f32 %v1122, %v1124
    %v1126 = vadd.f32 %v1122, %v1125
    %vm1127 = vweird.f32 %v1120
    %vm1128 = vweird.f32 %v1122
    %vm1129 = vmor %vm1127, %vm1128
    %v1130 = vsel %vm1129, %v1122, %v1126
    %v1131 = vand.u32 2147483647, %v1120
    %vm1132 = vcmp.eq.f32.partialorder %v1131, 8.507059e+37
    %v1133 = vand.u32 %v1120, 2147483648
    %v1134 = vor.u32 1.1754944e-38, %v1133
    %v1135 = vsel %vm1132, %v1134, %v1130
    %v1136 = vmul.f32 %v1085, %v1135
    %s1137 = scalar_lea.vmem %s6, 32
    %v1138 = vld [vmem:[%s1137] sm:$0xff]
    %v1139 = vld [vmem:[%s1137 + $0x8] sm:$0xff]
    %v1140 = vld [vmem:[%s1137 + $0x10] sm:$0xff]
    %v1141 = vld [vmem:[%s1137 + $0x18] sm:$0xff]
    %s1142 = scalar_lea.vmem %s7, 1
    %v1143 = vld [vmem:[%s1142] sm:$0x1]
    %v1145 = vperm.slane %v1143, 0
    %v1148 = vsel %vm159, %v978, 0
    %v1151 = vsel %vm159, %v1136, 0
    %1153 = vmatpush.msra.mxu0 0.0
    %1154 = vmatpush.msra.mxu0 0.0
    %1155 = vmatpush.msra.mxu0 0.0
    %1156 = vmatpush.msra.mxu0 0.0
    %1157 = vmatpush.msra.mxu0 0.0
    %1158 = vmatpush.msra.mxu0 0.0
    %1159 = vmatpush.msra.mxu0 0.0
    %1160 = vmatpush.msra.mxu0 0.0
    %1161 = vmatpush.msra.mxu0 0.0
    %1162 = vmatpush.msra.mxu0 0.0
    %1163 = vmatpush.msra.mxu0 0.0
    %1164 = vmatpush.msra.mxu0 0.0
    %1165 = vmatpush.msra.mxu0 %v1141
    %1166 = vmatpush.msra.mxu0 %v1140
    %1167 = vmatpush.msra.mxu0 %v1139
    %1168 = vmatpush.msra.mxu0 %v1138
    %1169 = vmatmul.f32.gmra.mxu0 %v1148
    %v1170 = vpop.f32.mrf.mxu0
    %v1171 = vadd.f32 %v1145, %v1170
    %1172 = vmatmul.f32.gmra.mxu0 %v1151
    %v1173 = vpop.f32.mrf.mxu0
    %v1174 = vadd.f32 %v1145, %v1173
    %1175 = vdwg.mxu0
    %v1176 = vadd.f32 %v768, %v1171
    %v1177 = vadd.f32 %v769, %v1174
    %s1178 = scalar_lea.vmem %s8, 1
    %v1179 = vld [vmem:[%s1178] sm:$0x1]
    %s1180 = scalar_lea.vmem %s9, 1
    %v1181 = vld [vmem:[%s1180] sm:$0x1]
    %v1182 = vsel %vm159, %v1176, 0.0
    %1183 = vadd.xlane.f32.xlu0 %v1182
    %v1184 = vpop.xlane.xlu0 %1183
    %v1185 = vsel %vm159, %v1177, 0.0
    %1186 = vadd.xlane.f32.xlu0 %v1185
    %v1187 = vpop.xlane.xlu0 %1186
    %v1188 = vmul.f32 %v1184, %v582
    %v1189 = vmul.f32 %v1187, %v582
    %v1190 = vsub.f32 %v1176, %v1188
    %v1191 = vsub.f32 %v1177, %v1189
    %v1192 = vmul.f32 %v1190, %v1190
    %v1193 = vmul.f32 %v1191, %v1191
    %v1194 = vsel %vm159, %v1192, 0.0
    %1195 = vadd.xlane.f32.xlu0 %v1194
    %v1196 = vpop.xlane.xlu0 %1195
    %v1197 = vsel %vm159, %v1193, 0.0
    %1198 = vadd.xlane.f32.xlu0 %v1197
    %v1199 = vpop.xlane.xlu0 %1198
    %v1200 = vmul.f32 %v1196, %v582
    %v1201 = vmul.f32 %v1199, %v582
    %v1202 = vadd.f32 %v1200, 1e-05
    %v1203 = vadd.f32 %v1201, 1e-05
    %v1204 = vrsqrt.pop %v1202
    %v1205 = vmul.f32 %v1204, %v1202
    %v1206 = vmul.f32 %v1205, %v1204
    %v1207 = vmul.f32 0.5, %v1206
    %v1208 = vsub.f32 1.5, %v1207
    %v1209 = vmul.f32 %v1204, %v1208
    %vm1210 = vweird.f32 %v1202
    %vm1211 = vweird.f32 %v1204
    %vm1212 = vmor %vm1210, %vm1211
    %v1213 = vsel %vm1212, %v1204, %v1209
    %v1214 = vrsqrt.pop %v1203
    %v1215 = vmul.f32 %v1214, %v1203
    %v1216 = vmul.f32 %v1215, %v1214
    %v1217 = vmul.f32 0.5, %v1216
    %v1218 = vsub.f32 1.5, %v1217
    %v1219 = vmul.f32 %v1214, %v1218
    %vm1220 = vweird.f32 %v1203
    %vm1221 = vweird.f32 %v1214
    %vm1222 = vmor %vm1220, %vm1221
    %v1223 = vsel %vm1222, %v1214, %v1219
    %v1224 = vmul.f32 %v1190, %v1213
    %v1225 = vmul.f32 %v1191, %v1223
    %v1227 = vperm.slane %v1179, 0
    %v1229 = vmul.f32 %v1224, %v1227
    %v1230 = vmul.f32 %v1225, %v1227
    %v1232 = vperm.slane %v1181, 0
    %v1234 = vadd.f32 %v1229, %v1232
    %v1235 = vadd.f32 %v1230, %v1232
    %s1236 = scalar_lea.vmem %s10, 32
    %v1237 = vld [vmem:[%s1236] sm:$0xff]
    %v1238 = vld [vmem:[%s1236 + $0x8] sm:$0xff]
    %v1239 = vld [vmem:[%s1236 + $0x10] sm:$0xff]
    %v1240 = vld [vmem:[%s1236 + $0x18] sm:$0xff]
    %s1241 = scalar_lea.vmem [#allocation8], 1
    %v1242 = vld [vmem:[%s1241] sm:$0x1]
    %v1244 = vperm.slane %v1242, 0
    %v1247 = vsel %vm159, %v1234, 0
    %v1250 = vsel %vm159, %v1235, 0
    %1252 = vmatpush.msra.mxu0 0.0
    %1253 = vmatpush.msra.mxu0 0.0
    %1254 = vmatpush.msra.mxu0 0.0
    %1255 = vmatpush.msra.mxu0 0.0
    %1256 = vmatpush.msra.mxu0 0.0
    %1257 = vmatpush.msra.mxu0 0.0
    %1258 = vmatpush.msra.mxu0 0.0
    %1259 = vmatpush.msra.mxu0 0.0
    %1260 = vmatpush.msra.mxu0 0.0
    %1261 = vmatpush.msra.mxu0 0.0
    %1262 = vmatpush.msra.mxu0 0.0
    %1263 = vmatpush.msra.mxu0 0.0
    %1264 = vmatpush.msra.mxu0 %v1240
    %1265 = vmatpush.msra.mxu0 %v1239
    %1266 = vmatpush.msra.mxu0 %v1238
    %1267 = vmatpush.msra.mxu0 %v1237
    %1268 = vmatmul.f32.gmra.mxu0 %v1247
    %v1269 = vpop.f32.mrf.mxu0
    %v1270 = vadd.f32 %v1244, %v1269
    %1271 = vmatmul.f32.gmra.mxu0 %v1250
    %v1272 = vpop.f32.mrf.mxu0
    %v1273 = vadd.f32 %v1244, %v1272
    %1274 = vdwg.mxu0
    %v1275 = vmax.f32 %v1270, 0.0
    %v1276 = vmax.f32 %v1273, 0.0
    %s1277 = scalar_lea.vmem %s12, 64
    %v1278 = vld [vmem:[%s1277] sm:$0xff]
    %v1279 = vld [vmem:[%s1277 + $0x8] sm:$0xff]
    %v1280 = vld [vmem:[%s1277 + $0x10] sm:$0xff]
    %v1281 = vld [vmem:[%s1277 + $0x18] sm:$0xff]
    %v1282 = vld [vmem:[%s1277 + $0x20] sm:$0xff]
    %v1283 = vld [vmem:[%s1277 + $0x28] sm:$0xff]
    %v1284 = vld [vmem:[%s1277 + $0x30] sm:$0xff]
    %v1285 = vld [vmem:[%s1277 + $0x38] sm:$0xff]
    %s1286 = scalar_lea.vmem %s13, 1
    %v1287 = vld [vmem:[%s1286] sm:$0x1]
    %v1289 = vperm.slane %v1287, 0
    %v1292 = vsel %vm682, %v1275, 0
    %v1295 = vsel %vm682, %v1276, 0
    %1297 = vmatpush.msra.mxu0 0.0
    %1298 = vmatpush.msra.mxu0 0.0
    %1299 = vmatpush.msra.mxu0 0.0
    %1300 = vmatpush.msra.mxu0 0.0
    %1301 = vmatpush.msra.mxu0 0.0
    %1302 = vmatpush.msra.mxu0 0.0
    %1303 = vmatpush.msra.mxu0 0.0
    %1304 = vmatpush.msra.mxu0 0.0
    %1305 = vmatpush.msra.mxu0 %v1285
    %1306 = vmatpush.msra.mxu0 %v1284
    %1307 = vmatpush.msra.mxu0 %v1283
    %1308 = vmatpush.msra.mxu0 %v1282
    %1309 = vmatpush.msra.mxu0 %v1281
    %1310 = vmatpush.msra.mxu0 %v1280
    %1311 = vmatpush.msra.mxu0 %v1279
    %1312 = vmatpush.msra.mxu0 %v1278
    %1313 = vmatmul.f32.gmra.mxu0 %v1292
    %v1314 = vpop.f32.mrf.mxu0
    %v1315 = vadd.f32 %v1289, %v1314
    %1316 = vmatmul.f32.gmra.mxu0 %v1295
    %v1317 = vpop.f32.mrf.mxu0
    %v1318 = vadd.f32 %v1289, %v1317
    %1319 = vdwg.mxu0
    %v1320 = vadd.f32 %v1234, %v1315
    %v1321 = vadd.f32 %v1235, %v1318
    %s1322 = scalar_lea.vmem %s14, 1
    %v1323 = vld [vmem:[%s1322] sm:$0x1]
    %s1324 = scalar_lea.vmem %s15, 1
    %v1325 = vld [vmem:[%s1324] sm:$0x1]
    %v1326 = vsel %vm159, %v1320, 0.0
    %1327 = vadd.xlane.f32.xlu0 %v1326
    %v1328 = vpop.xlane.xlu0 %1327
    %v1329 = vsel %vm159, %v1321, 0.0
    %1330 = vadd.xlane.f32.xlu0 %v1329
    %v1331 = vpop.xlane.xlu0 %1330
    %v1332 = vmul.f32 %v1328, %v582
    %v1333 = vmul.f32 %v1331, %v582
    %v1334 = vsub.f32 %v1320, %v1332
    %v1335 = vsub.f32 %v1321, %v1333
    %v1336 = vmul.f32 %v1334, %v1334
    %v1337 = vmul.f32 %v1335, %v1335
    %v1338 = vsel %vm159, %v1336, 0.0
    %1339 = vadd.xlane.f32.xlu0 %v1338
    %v1340 = vpop.xlane.xlu0 %1339
    %v1341 = vsel %vm159, %v1337, 0.0
    %1342 = vadd.xlane.f32.xlu0 %v1341
    %v1343 = vpop.xlane.xlu0 %1342
    %v1344 = vmul.f32 %v1340, %v582
    %v1345 = vmul.f32 %v1343, %v582
    %v1346 = vadd.f32 %v1344, 1e-05
    %v1347 = vadd.f32 %v1345, 1e-05
    %v1348 = vrsqrt.pop %v1346
    %v1349 = vmul.f32 %v1348, %v1346
    %v1350 = vmul.f32 %v1349, %v1348
    %v1351 = vmul.f32 0.5, %v1350
    %v1352 = vsub.f32 1.5, %v1351
    %v1353 = vmul.f32 %v1348, %v1352
    %vm1354 = vweird.f32 %v1346
    %vm1355 = vweird.f32 %v1348
    %vm1356 = vmor %vm1354, %vm1355
    %v1357 = vsel %vm1356, %v1348, %v1353
    %v1358 = vrsqrt.pop %v1347
    %v1359 = vmul.f32 %v1358, %v1347
    %v1360 = vmul.f32 %v1359, %v1358
    %v1361 = vmul.f32 0.5, %v1360
    %v1362 = vsub.f32 1.5, %v1361
    %v1363 = vmul.f32 %v1358, %v1362
    %vm1364 = vweird.f32 %v1347
    %vm1365 = vweird.f32 %v1358
    %vm1366 = vmor %vm1364, %vm1365
    %v1367 = vsel %vm1366, %v1358, %v1363
    %v1368 = vmul.f32 %v1334, %v1357
    %v1369 = vmul.f32 %v1335, %v1367
    %v1371 = vperm.slane %v1323, 0
    %v1373 = vmul.f32 %v1368, %v1371
    %v1374 = vmul.f32 %v1369, %v1371
    %v1376 = vperm.slane %v1325, 0
    %v1378 = vadd.f32 %v1373, %v1376
    %v1379 = vadd.f32 %v1374, %v1376
    %v1380 = vld [vmem:[%s16] sm:$0x1]
    %v1381 = vld [vmem:[%s17] sm:$0x1]
    %v1382 = vsel %vm159, %v1378, 0.0
    %1383 = vadd.xlane.f32.xlu0 %v1382
    %v1384 = vpop.xlane.xlu0 %1383
    %v1385 = vsel %vm159, %v1379, 0.0
    %1386 = vadd.xlane.f32.xlu0 %v1385
    %v1387 = vpop.xlane.xlu0 %1386
    %v1388 = vmul.f32 %v1384, %v582
    %v1389 = vmul.f32 %v1387, %v582
    %v1390 = vsub.f32 %v1378, %v1388
    %v1391 = vsub.f32 %v1379, %v1389
    %v1392 = vmul.f32 %v1390, %v1390
    %v1393 = vmul.f32 %v1391, %v1391
    %v1394 = vsel %vm159, %v1392, 0.0
    %1395 = vadd.xlane.f32.xlu0 %v1394
    %v1396 = vpop.xlane.xlu0 %1395
    %v1397 = vsel %vm159, %v1393, 0.0
    %1398 = vadd.xlane.f32.xlu0 %v1397
    %v1399 = vpop.xlane.xlu0 %1398
    %v1400 = vmul.f32 %v1396, %v582
    %v1401 = vmul.f32 %v1399, %v582
    %v1402 = vadd.f32 %v1400, 1e-05
    %v1403 = vadd.f32 %v1401, 1e-05
    %v1404 = vrsqrt.pop %v1402
    %v1405 = vmul.f32 %v1404, %v1402
    %v1406 = vmul.f32 %v1405, %v1404
    %v1407 = vmul.f32 0.5, %v1406
    %v1408 = vsub.f32 1.5, %v1407
    %v1409 = vmul.f32 %v1404, %v1408
    %vm1410 = vweird.f32 %v1402
    %vm1411 = vweird.f32 %v1404
    %vm1412 = vmor %vm1410, %vm1411
    %v1413 = vsel %vm1412, %v1404, %v1409
    %v1414 = vrsqrt.pop %v1403
    %v1415 = vmul.f32 %v1414, %v1403
    %v1416 = vmul.f32 %v1415, %v1414
    %v1417 = vmul.f32 0.5, %v1416
    %v1418 = vsub.f32 1.5, %v1417
    %v1419 = vmul.f32 %v1414, %v1418
    %vm1420 = vweird.f32 %v1403
    %vm1421 = vweird.f32 %v1414
    %vm1422 = vmor %vm1420, %vm1421
    %v1423 = vsel %vm1422, %v1414, %v1419
    %v1424 = vmul.f32 %v1390, %v1413
    %v1425 = vmul.f32 %v1391, %v1423
    %v1427 = vperm.slane %v1380, 0
    %v1429 = vmul.f32 %v1424, %v1427
    %v1430 = vmul.f32 %v1425, %v1427
    %v1432 = vperm.slane %v1381, 0
    %v1434 = vadd.f32 %v1429, %v1432
    %v1435 = vadd.f32 %v1430, %v1432
    %v1436 = vld [vmem:[#allocation5] sm:$0x3]
    %vm1437 = vcmask 130048
    %v1439 = vsel %vm1437, %v1436, 0
    %1441 = vmatpush.msra.mxu0 0.0
    %1442 = vmatpush.msra.mxu0 0.0
    %1443 = vmatpush.msra.mxu0 0.0
    %1444 = vmatpush.msra.mxu0 0.0
    %1445 = vmatpush.msra.mxu0 0.0
    %1446 = vmatpush.msra.mxu0 0.0
    %1447 = vmatpush.msra.mxu0 0.0
    %1448 = vmatpush.msra.mxu0 0.0
    %1449 = vmatpush.msra.mxu0 0.0
    %1450 = vmatpush.msra.mxu0 0.0
    %1451 = vmatpush.msra.mxu0 0.0
    %1452 = vmatpush.msra.mxu0 0.0
    %1453 = vmatpush.msra.mxu0 0.0
    %1454 = vmatpush.msra.mxu0 0.0
    %1455 = vmatpush.msra.mxu0 %v1435
    %1456 = vmatpush.msra.mxu0 %v1434
    %1457 = vmatmul.f32.gmra.mxu0 %v1439
    %v1458 = vpop.f32.mrf.mxu0
    %v1459 = vadd.f32 0.0, %v1458
    %1460 = vdwg.mxu0
    %vm1461 = vcmask 123904
    %v1462 = vsel %vm1461, %v1436, 0.0
    %1463 = vadd.xlane.f32.xlu0 %v1462
    %v1464 = vpop.xlane.xlu0 %1463
    %v1465 = vmax.f32 %v1464, 1.0
    %v1466 = vrcp.pop %v1465
    %v1467 = vmul.f32 %v1465, %v1466
    %v1468 = vsub.f32 1.0, %v1467
    %v1469 = vmul.f32 %v1466, %v1468
    %v1470 = vadd.f32 %v1466, %v1469
    %vm1471 = vweird.f32 %v1465
    %vm1472 = vweird.f32 %v1466
    %vm1473 = vmor %vm1471, %vm1472
    %v1474 = vsel %vm1473, %v1466, %v1470
    %v1475 = vand.u32 2147483647, %v1465
    %vm1476 = vcmp.eq.f32.partialorder %v1475, 8.507059e+37
    %v1477 = vand.u32 %v1465, 2147483648
    %v1478 = vor.u32 1.1754944e-38, %v1477
    %v1479 = vsel %vm1476, %v1478, %v1474
    %v1480 = vmul.f32 %v1459, %v1479
    %vm1481 = vcmask 254976
    %1482 = vst.msk [vmem:[#allocation11] sm:$0x3] %vm1481, %v1480
    // Predicated region
    $region98: #{tpu_custom_call.1} parent=1 // pred_check
      _
    $region99: #{tpu_custom_call.1} parent=1 // pred_check_branch
      %1484 = sbr.rel (0) target = $region101
    $region100: #{tpu_custom_call.1} parent=1 // pred_region
      %1486 = vsyncadd [#allocation4], 0
      %s1488 = sshll.u32 [#allocation11], 4
      %s1489 = int_to_ptr.vmem [resolvable:$true] %s1488
      %s1490 = sshll.u32 %s19, 4
      %s1491 = int_to_ptr.hbm [resolvable:$true] %s1490
      %1493 = dma.vmem_to_hbm [thread:$0]  %s1489, 32, %s1491, [#allocation4]
    $region101: #{tpu_custom_call.1} parent=1 // pred_fallthru
      _
    // Predicated region
    $region102: #{tpu_custom_call.1} parent=1 // pred_check
      _
    $region103: #{tpu_custom_call.1} parent=1 // pred_check_branch
      %1495 = sbr.rel (0) target = $region105
    $region104: #{tpu_custom_call.1} parent=1 // pred_region
      %1497 = dma.done [#allocation4], 32
    $region105: #{tpu_custom_call.1} parent=1 // pred_fallthru
      _
    %1498 = vsyncpa [#allocation3], 1
    %1499 = vsyncpa [#allocation6], 1
    %1500 = vsyncpa [#allocation9], 1
    %1501 = vsyncpa [#allocation4], 1

</llo_original>
